<compile_context>
chip_gen: v7x
topology: tpu7x:2x2x1
jax: 0.10.0
libtpu: 0.0.40
codegen_flags: <defaults>
</compile_context>

<pallas_src>
import jax
import jax.numpy as jnp
import numpy as np
from jax import lax
from jax.experimental import pallas as pl
from jax.experimental.pallas import tpu as pltpu

F = 8            # module's self.F (output channels per branch)
CIN = 48         # Block2 input channels (fixed by the module)
NF = 3 * F       # concatenated channels (24)


def _branch_geometry(kernel_size):
    k1 = kernel_size // 4
    k2 = kernel_size // 8
    k3 = kernel_size // 16
    pads = [
        (kernel_size // 8 - 1, kernel_size // 8),                 # branch1 ZeroPad2d
        ((kernel_size // 8) // 2 - 1, (kernel_size // 8) // 2),   # branch2 ZeroPad2d
        (k3 // 2, k3 // 2),                                       # branch3 ZeroPad2d
    ]
    return [k1, k2, k3], pads


def _fuse_params(params, W, kernel_size):
    """Fold all three (1,k) convs, their bias, the output ZeroPad2d and the eval-mode
    BatchNorm (eps=0) into one banded (W*CIN, W*NF) matrix, a per-position bias row
    and a constant AvgPool((1,2)) matrix (all trace-time numpy constants)."""
    ks, pads = _branch_geometry(kernel_size)
    assert kernel_size // 16 >= 1
    Wh = W // 2
    w_mat = np.zeros((W * CIN, W * NF), np.float32)
    bias_vec = np.zeros((W, NF), np.float32)
    for i, ((w_oihw, b, scale, shift), k, (padl, padr)) in enumerate(zip(params, ks, pads)):
        # Same invariant the PyTorch module needs for torch.cat to succeed.
        assert padl + padr == k - 1, \
            "kernel_size must make all padded branch widths equal (kernel_size/16 odd)"
        assert W >= k
        w = np.asarray(w_oihw, np.float32)                      # (F, CIN, 1, k)
        b = np.asarray(b, np.float32).reshape(F)
        scale = np.asarray(scale, np.float32).reshape(F)
        shift = np.asarray(shift, np.float32).reshape(F)
        wt = np.transpose(w[:, :, 0, :], (2, 1, 0)) * scale[None, None, :]   # (k, CIN, F)
        b_eff = b * scale + shift                               # conv bias after BN
        for wpos in range(W):
            valid = padl <= wpos <= W - k + padl                # valid-conv span after pad
            cols = slice(wpos * NF + i * F, wpos * NF + (i + 1) * F)
            if valid:
                for tap in range(k):
                    src = wpos - padl + tap                     # original input position
                    w_mat[src * CIN:(src + 1) * CIN, cols] = wt[tap]
                bias_vec[wpos, i * F:(i + 1) * F] = b_eff
            else:
                # ZeroPad2d position: conv output forced to 0, then BN(0) = shift.
                bias_vec[wpos, i * F:(i + 1) * F] = shift
    # AvgPool2d((1, 2)) as a matmul: average adjacent width positions per channel.
    pool = np.zeros((W * NF, Wh * NF), np.float32)
    for wpos in range(W):
        for c in range(NF):
            pool[wpos * NF + c, (wpos // 2) * NF + c] = 0.5
    return (jnp.asarray(w_mat, jnp.bfloat16),
            jnp.asarray(bias_vec.reshape(1, W * NF), jnp.float32),
            jnp.asarray(pool, jnp.bfloat16))


def _kernel(x_ref, w_ref, b_ref, p_ref, out_ref):
    # x_ref  : (TR, W*CIN)      bf16 -- TR image rows, whole width on the lane axis
    # w_ref  : (W*CIN, W*NF)    bf16 -- banded folded weights (bias/BN/ZeroPad2d folded)
    # b_ref  : (1, W*NF)        f32  -- folded bias where valid, BN shift where padded
    # p_ref  : (W*NF, (W/2)*NF) bf16 -- constant 0.5 AvgPool((1,2)) matrix
    # out_ref: (TR, (W/2)*NF)   bf16 -- lane-dense pooled output
    acc = jnp.dot(x_ref[...], w_ref[...], preferred_element_type=jnp.float32)
    y = acc + b_ref[...]                                             # bias / BN shift
    y = jnp.where(y > 0.0, y, jnp.exp(jnp.minimum(y, 0.0)) - 1.0)    # ELU
    pooled = jnp.dot(y.astype(jnp.bfloat16), p_ref[...],
                     preferred_element_type=jnp.float32)             # AvgPool((1,2))
    out_ref[...] = pooled.astype(jnp.bfloat16)


def _round_up(x, m):
    return ((x + m - 1) // m) * m


def _pick_tr(R, W, tr_target=512, budget_bytes=10 << 20):
    """Rows per grid step from a lane-padding-aware VMEM estimate (fits the default
    scoped VMEM on v5e/v6e/v7x), capped so the grid has >=4 steps when R allows it."""
    lane = lambda n: _round_up(n, 128)
    Wh = W // 2
    kin, kmid, kout = W * CIN, W * NF, Wh * NF
    const_bytes = 2 * (kin * lane(kmid) * 2      # folded weights (double-buffered)
                       + kmid * lane(kout) * 2   # pooling matrix
                       + 8 * lane(kmid) * 4)     # bias row
    per_row = (2 * lane(kin) * 2        # double-buffered bf16 input block
               + 2 * lane(kmid) * 4     # f32 matmul accumulator + ELU intermediate
               + lane(kmid) * 2         # bf16 copy feeding the pooling matmul
               + lane(kout) * 4         # pooled f32
               + 2 * lane(kout) * 2)    # double-buffered bf16 output block
    tr = max(8, min(tr_target, (budget_bytes - const_bytes) // per_row))
    tr = min(tr, max(8, _round_up(-(-R // 4), 8)))   # aim for >=4 grid steps (v7x megacore)
    return max(8, (tr // 8) * 8)


def inception_block2_pallas(x_nchw, params, kernel_size, tr_target=512):
    N, C, H, W = x_nchw.shape
    assert C == CIN
    assert W % 2 == 0                    # AvgPool2d((1, 2)) needs an even width
    w_mat, bias_vec, pool_mat = _fuse_params(params, W, kernel_size)

    R, Wh = N * H, W // 2
    TR = _pick_tr(R, W, tr_target)
    Rp = _round_up(R, TR)

    # One relayout pass: NCHW -> (rows, W*Cin) with the whole width*channel extent on
    # the lane axis, rows zero-padded to a TR multiple, cast to bf16 for the HBM DMA.
    x_rows = jnp.pad(
        jnp.transpose(x_nchw, (0, 2, 3, 1)).reshape(R, W * CIN).astype(jnp.bfloat16),
        ((0, Rp - R), (0, 0)))

    out = pl.pallas_call(
        _kernel,
        out_shape=jax.ShapeDtypeStruct((Rp, Wh * NF), jnp.bfloat16),
        grid=(Rp // TR,),
        in_specs=[
            pl.BlockSpec((TR, W * CIN), lambda r: (r, 0)),
            pl.BlockSpec((W * CIN, W * NF), lambda r: (0, 0)),
            pl.BlockSpec((1, W * NF), lambda r: (0, 0)),
            pl.BlockSpec((W * NF, Wh * NF), lambda r: (0, 0)),
        ],
        out_specs=pl.BlockSpec((TR, Wh * NF), lambda r: (r, 0)),
        compiler_params=pltpu.CompilerParams(dimension_semantics=("parallel",)),
    )(x_rows, w_mat, bias_vec, pool_mat)

    # (Rp, Wh*NF) bf16 -> NCHW f32 (metadata reshape + one transpose/convert pass).
    out = out[:R].reshape(N, H, Wh, NF).astype(jnp.float32)
    return jnp.transpose(out, (0, 3, 1, 2))              # (N, 24, H, W//2)


def init_params(key, kernel_size):
    """Deterministic synthetic parameters: conv W/b + eval-BN scale/shift (eps=0)."""
    ks, _ = _branch_geometry(kernel_size)
    params = []
    for k in ks:
        key, kw, kb, kg, kbe, km, kv = jax.random.split(key, 7)
        w_oihw = 0.1 * jax.random.normal(kw, (F, CIN, 1, k), jnp.float32)
        b = 0.1 * jax.random.normal(kb, (F,), jnp.float32)
        gamma = 1.0 + 0.1 * jax.random.normal(kg, (F,), jnp.float32)
        beta = 0.1 * jax.random.normal(kbe, (F,), jnp.float32)
        r_mean = 0.1 * jax.random.normal(km, (F,), jnp.float32)
        r_var = 1.0 + 0.1 * jax.random.uniform(kv, (F,), jnp.float32)
        scale = gamma / jnp.sqrt(r_var)            # BatchNorm2d(F, False) -> eps == 0
        shift = beta - r_mean * scale
        params.append((w_oihw, b, scale, shift))
    return params


def reference_forward(x, params, kernel_size):
    """Pure-JAX NCHW f32 reference mirroring the PyTorch module (eval semantics)."""
    _, pads = _branch_geometry(kernel_size)
    outs = []
    for (w, b, scale, shift), (padl, padr) in zip(params, pads):
        y = lax.conv_general_dilated(
            x, w, window_strides=(1, 1), padding='VALID',
            dimension_numbers=('NCHW', 'OIHW', 'NCHW'),
            precision=lax.Precision.HIGHEST)
        y = y + b[None, :, None, None]
        y = jnp.pad(y, ((0, 0), (0, 0), (0, 0), (padl, padr)))
        y = y * scale[None, :, None, None] + shift[None, :, None, None]
        y = jnp.where(y > 0, y, jnp.exp(jnp.minimum(y, 0.0)) - 1.0)
        outs.append(y)
    n2 = jnp.concatenate(outs, axis=1)
    Nb, Cc, Hh, Wd = n2.shape
    return n2.reshape(Nb, Cc, Hh, Wd // 2, 2).mean(axis=-1)


if __name__ == "__main__":
    kernel_size = 16          # kernel_size/16 must be odd so the branch widths match
    N, H, W = 2, 8, 16
    key = jax.random.PRNGKey(0)
    key, xk = jax.random.split(key)
    x = jax.random.normal(xk, (N, CIN, H, W), jnp.float32)
    params = init_params(key, kernel_size)

    out = jax.block_until_ready(inception_block2_pallas(x, params, kernel_size))
    ref = reference_forward(x, params, kernel_size)
    assert out.shape == ref.shape == (N, NF, H, W // 2)
    # bf16 activations/weights on the MXU (f32 accumulation): expected error of the
    # folded dot products is ~1e-2 worst case, so compare at a 2e-2 tolerance.
    np.testing.assert_allclose(np.asarray(out), np.asarray(ref), rtol=2e-2, atol=2e-2)
    print("KERNEL_OK")
</pallas_src>

<mosaic_0001>
module attributes {stable_mosaic.version = 11 : i64} {
  func.func @_kernel(%arg0: i32, %arg1: memref<8x768xbf16, #tpu.memory_space<vmem>>, %arg2: memref<768x384xbf16, #tpu.memory_space<vmem>>, %arg3: memref<1x384xf32, #tpu.memory_space<vmem>>, %arg4: memref<384x192xbf16, #tpu.memory_space<vmem>>, %arg5: memref<8x192xbf16, #tpu.memory_space<vmem>>) attributes {dimension_semantics = [#tpu.dimension_semantics<parallel>], iteration_bounds = array<i64: 2>, scalar_prefetch = 0 : i64, scratch_operands = 0 : i64, tpu.core_type = #tpu.core_type<tc>, window_params = [{transform_indices = @transform_0, window_bounds = array<i64: 8, 768>}, {pipeline_mode = #tpu.pipeline_mode<synchronous>, transform_indices = @transform_1, window_bounds = array<i64: 768, 384>}, {pipeline_mode = #tpu.pipeline_mode<synchronous>, transform_indices = @transform_2, window_bounds = array<i64: 1, 384>}, {pipeline_mode = #tpu.pipeline_mode<synchronous>, transform_indices = @transform_3, window_bounds = array<i64: 384, 192>}, {transform_indices = @transform_4, window_bounds = array<i64: 8, 192>}]} {
    %c0 = arith.constant 0 : index
    %c0_0 = arith.constant 0 : index
    %0 = vector.load %arg1[%c0, %c0_0] : memref<8x768xbf16, #tpu.memory_space<vmem>>, vector<8x768xbf16>
    %c0_1 = arith.constant 0 : index
    %c0_2 = arith.constant 0 : index
    %1 = vector.load %arg2[%c0_1, %c0_2] : memref<768x384xbf16, #tpu.memory_space<vmem>>, vector<768x384xbf16>
    %cst = arith.constant dense<0.000000e+00> : vector<8x384xf32>
    %2 = tpu.matmul %0, %1, %cst {dimension_numbers = #tpu.dot_dimension_numbers<[1], [0], [0], [1], [0, 0, 1, 1], [], []>} : vector<8x768xbf16>, vector<768x384xbf16>, vector<8x384xf32> -> vector<8x384xf32>
    %c0_3 = arith.constant 0 : index
    %c0_4 = arith.constant 0 : index
    %3 = vector.load %arg3[%c0_3, %c0_4] : memref<1x384xf32, #tpu.memory_space<vmem>>, vector<1x384xf32>
    %4 = vector.broadcast %3 : vector<1x384xf32> to vector<8x384xf32>
    %5 = arith.addf %2, %4 : vector<8x384xf32>
    %cst_5 = arith.constant 0.000000e+00 : f32
    %6 = vector.broadcast %cst_5 : f32 to vector<8x384xf32>
    %7 = arith.cmpf ogt, %5, %6 : vector<8x384xf32>
    %cst_6 = arith.constant 0.000000e+00 : f32
    %8 = vector.broadcast %cst_6 : f32 to vector<8x384xf32>
    %9 = arith.minimumf %5, %8 : vector<8x384xf32>
    %10 = math.exp %9 : vector<8x384xf32>
    %cst_7 = arith.constant 1.000000e+00 : f32
    %11 = vector.broadcast %cst_7 : f32 to vector<8x384xf32>
    %12 = arith.subf %10, %11 : vector<8x384xf32>
    %13 = arith.select %7, %5, %12 : vector<8x384xi1>, vector<8x384xf32>
    %14 = arith.truncf %13 : vector<8x384xf32> to vector<8x384xbf16>
    %c0_8 = arith.constant 0 : index
    %c0_9 = arith.constant 0 : index
    %15 = vector.load %arg4[%c0_8, %c0_9] : memref<384x192xbf16, #tpu.memory_space<vmem>>, vector<384x192xbf16>
    %cst_10 = arith.constant dense<0.000000e+00> : vector<8x192xf32>
    %16 = tpu.matmul %14, %15, %cst_10 {dimension_numbers = #tpu.dot_dimension_numbers<[1], [0], [0], [1], [0, 0, 1, 1], [], []>} : vector<8x384xbf16>, vector<384x192xbf16>, vector<8x192xf32> -> vector<8x192xf32>
    %17 = arith.truncf %16 : vector<8x192xf32> to vector<8x192xbf16>
    %c0_11 = arith.constant 0 : index
    %c0_12 = arith.constant 0 : index
    %18 = vector.load %arg5[%c0_11, %c0_12] : memref<8x192xbf16, #tpu.memory_space<vmem>>, vector<8x192xbf16>
    tpu.vector_store %arg5[%c0_11, %c0_12], %17 {strides = array<i32>} : memref<8x192xbf16, #tpu.memory_space<vmem>>, vector<8x192xbf16>,
    return
  }
  func.func @transform_0(%arg0: i32) -> (i32, i32) {
    %c0_i32 = arith.constant 0 : i32
    %c0_i32_0 = arith.constant 0 : i32
    return %arg0, %c0_i32 : i32, i32
  }
  func.func @transform_1(%arg0: i32) -> (i32, i32) {
    %c0_i32 = arith.constant 0 : i32
    %c0_i32_0 = arith.constant 0 : i32
    %c0_i32_1 = arith.constant 0 : i32
    return %c0_i32, %c0_i32_0 : i32, i32
  }
  func.func @transform_2(%arg0: i32) -> (i32, i32) {
    %c0_i32 = arith.constant 0 : i32
    %c0_i32_0 = arith.constant 0 : i32
    %c0_i32_1 = arith.constant 0 : i32
    return %c0_i32, %c0_i32_0 : i32, i32
  }
  func.func @transform_3(%arg0: i32) -> (i32, i32) {
    %c0_i32 = arith.constant 0 : i32
    %c0_i32_0 = arith.constant 0 : i32
    %c0_i32_1 = arith.constant 0 : i32
    return %c0_i32, %c0_i32_0 : i32, i32
  }
  func.func @transform_4(%arg0: i32) -> (i32, i32) {
    %c0_i32 = arith.constant 0 : i32
    %c0_i32_0 = arith.constant 0 : i32
    return %arg0, %c0_i32 : i32, i32
  }
}

</mosaic_0001>

<llo_original>
// kernel: tpu_custom_call.1
$region0: #{tpu_custom_call.1}
  #allocation0 [shape = 'u32[]', space=smem, size = 0x4, offset = 0x4, fixed_abs, tag = 'smem constant byte address 0x4 - core index']
  #allocation1 [shape = 'u32[144,128]{1,0:T(1,128)}', space=vmem, size = 0x12000, scoped, tag = 'internal scratch']
  %s0 = inlined_call_operand.vmem [shape: bf16[16,768], index: 0, kind: input, shape index: {}]
  %s1 = inlined_call_operand.hbm [shape: bf16[768,384], index: 1, kind: input, shape index: {}]
  %s2 = inlined_call_operand.vmem [shape: f32[1,384], index: 2, kind: input, shape index: {}]
  %s3 = inlined_call_operand.vmem [shape: bf16[384,192], index: 3, kind: input, shape index: {}]
  %s4 = inlined_call_operand.hbm [shape: bf16[16,192], index: 4, kind: output, shape index: {}]
  %s5 = sld [smem:[#allocation0]]
  $region53: #{tpu_custom_call.1} parent=0
    _
  %s7 = ssub.s32 1, %s5
  %s8 = scalar_select 0, %s7, %s5
  $region1: #{tpu_custom_call.1} parent=0
    #allocation2 [shape = 'u8[589824]{0}', space=vmem, size = 0x90000, scoped, tag = 'input window, operand 1, single buffered']
    #allocation3 [shape = 's32[2]{0}', space=sflag, size = 0x8, scoped, tag = 'scoped memory for tpu_custom_call.1']
    #allocation4 [shape = 's32[2]{0}', space=sflag, size = 0x8, scoped, tag = 'scoped memory for tpu_custom_call.1']
    #allocation5 [shape = 'u8[8192]{0}', space=vmem, size = 0x2000, scoped, tag = 'output window, operand 0']
    %9 = vsyncpa [#allocation3], 0
    %10 = vsyncpa [#allocation4], 0
    %s11 = scalar_lea.sflag [#allocation4], 1
    %12 = vsyncpa %s11, 0
    loop: start=0, step=1, limit=4
    $region2: #{tpu_custom_call.1} parent=1 // loop_pre_header
      _
    $region3: #{tpu_custom_call.1} parent=1 // loop_header
      %s14 = sphi 0, %s18
      %p15 = scmp.ge.s32.totalorder %s14, 4
      %s24 = sphi 0, %s26
      %s27 = sphi 0, %s24
      %s28 = sphi 0, %s27
      %s44 = sphi 0, %s28
      %s48 = sphi 0, %s48
      %s50 = sphi 0, %s48
      %s51 = sphi 0, %s50
      %s65 = sphi 0, %s51
      %s69 = sphi 0, %s69
      %s71 = sphi 0, %s69
      %s72 = sphi 0, %s71
      %s86 = sphi 0, %s72
      %s90 = sphi 0, %s90
      %s92 = sphi 0, %s90
      %s93 = sphi 0, %s92
      %s107 = sphi 0, %s93
      %s113 = sphi 0, %s115
      %s116 = sphi 0, %s113
      %s117 = sphi 0, %s116
      %s133 = sphi 0, %s117
    $region4: #{tpu_custom_call.1} parent=1 // loop_header_branch
      %17 = sbr.rel (%p15) target = $region8
    $region5: #{tpu_custom_call.1} parent=1 // loop_body
      %s19 = ssub.s32 %s14, 1
      %s20 = ssub.s32 %s14, 2
      %s21 = sadd.s32 %s14, 1
      %s22 = ssub.s32 %s14, %s21
      %p23 = scmp.eq.s32.totalorder %s22, 0
      %s25 = sadd.s32 %s24, 1
      %s26 = scalar_select %p23, %s24, %s25
      %p29 = pneg %p23
      %p30 = scmp.eq.s32.totalorder %s14, 1
      %p31 = por %p29, %p30
      %p32 = scmp.ne.s32.totalorder %s24, %s27
      %p33 = scmp.eq.s32.totalorder %s14, 0
      %p34 = por %p32, %p33
      %p35 = scmp.ne.s32.totalorder %s24, %s27
      %p36 = scmp.eq.s32.totalorder %s19, 1
      %p37 = por %p35, %p36
      %p38 = scmp.ne.s32.totalorder %s27, %s28
      %p39 = scmp.eq.s32.totalorder %s19, 0
      %p40 = por %p38, %p39
      %p41 = scmp.ne.s32.totalorder %s27, %s28
      %p42 = scmp.eq.s32.totalorder %s20, 1
      %p43 = por %p41, %p42
      %p45 = scmp.ne.s32.totalorder %s28, %s44
      %p46 = scmp.eq.s32.totalorder %s20, 0
      %p47 = por %p45, %p46
      %s49 = sadd.s32 %s48, 1
      %p52 = scmp.eq.s32.totalorder %s14, 1
      %p53 = scmp.ne.s32.totalorder %s48, %s50
      %p54 = scmp.eq.s32.totalorder %s14, 0
      %p55 = por %p53, %p54
      %p56 = scmp.ne.s32.totalorder %s48, %s50
      %p57 = scmp.eq.s32.totalorder %s19, 1
      %p58 = por %p56, %p57
      %p59 = scmp.ne.s32.totalorder %s50, %s51
      %p60 = scmp.eq.s32.totalorder %s19, 0
      %p61 = por %p59, %p60
      %p62 = scmp.ne.s32.totalorder %s50, %s51
      %p63 = scmp.eq.s32.totalorder %s20, 1
      %p64 = por %p62, %p63
      %p66 = scmp.ne.s32.totalorder %s51, %s65
      %p67 = scmp.eq.s32.totalorder %s20, 0
      %p68 = por %p66, %p67
      %s70 = sadd.s32 %s69, 1
      %p73 = scmp.eq.s32.totalorder %s14, 1
      %p74 = scmp.ne.s32.totalorder %s69, %s71
      %p75 = scmp.eq.s32.totalorder %s14, 0
      %p76 = por %p74, %p75
      %p77 = scmp.ne.s32.totalorder %s69, %s71
      %p78 = scmp.eq.s32.totalorder %s19, 1
      %p79 = por %p77, %p78
      %p80 = scmp.ne.s32.totalorder %s71, %s72
      %p81 = scmp.eq.s32.totalorder %s19, 0
      %p82 = por %p80, %p81
      %p83 = scmp.ne.s32.totalorder %s71, %s72
      %p84 = scmp.eq.s32.totalorder %s20, 1
      %p85 = por %p83, %p84
      %p87 = scmp.ne.s32.totalorder %s72, %s86
      %p88 = scmp.eq.s32.totalorder %s20, 0
      %p89 = por %p87, %p88
      %s91 = sadd.s32 %s90, 1
      %p94 = scmp.eq.s32.totalorder %s14, 1
      %p95 = scmp.ne.s32.totalorder %s90, %s92
      %p96 = scmp.eq.s32.totalorder %s14, 0
      %p97 = por %p95, %p96
      %p98 = scmp.ne.s32.totalorder %s90, %s92
      %p99 = scmp.eq.s32.totalorder %s19, 1
      %p100 = por %p98, %p99
      %p101 = scmp.ne.s32.totalorder %s92, %s93
      %p102 = scmp.eq.s32.totalorder %s19, 0
      %p103 = por %p101, %p102
      %p104 = scmp.ne.s32.totalorder %s92, %s93
      %p105 = scmp.eq.s32.totalorder %s20, 1
      %p106 = por %p104, %p105
      %p108 = scmp.ne.s32.totalorder %s93, %s107
      %p109 = scmp.eq.s32.totalorder %s20, 0
      %p110 = por %p108, %p109
      %s111 = ssub.s32 %s14, %s21
      %p112 = scmp.eq.s32.totalorder %s111, 0
      %s114 = sadd.s32 %s113, 1
      %s115 = scalar_select %p112, %s113, %s114
      %p118 = pneg %p112
      %p119 = scmp.eq.s32.totalorder %s14, 1
      %p120 = por %p118, %p119
      %p121 = scmp.ne.s32.totalorder %s113, %s116
      %p122 = scmp.eq.s32.totalorder %s14, 0
      %p123 = por %p121, %p122
      %p124 = scmp.ne.s32.totalorder %s113, %s116
      %p125 = scmp.eq.s32.totalorder %s19, 1
      %p126 = por %p124, %p125
      %p127 = scmp.ne.s32.totalorder %s116, %s117
      %p128 = scmp.eq.s32.totalorder %s19, 0
      %p129 = por %p127, %p128
      %p130 = scmp.ne.s32.totalorder %s116, %s117
      %p131 = scmp.eq.s32.totalorder %s20, 1
      %p132 = por %p130, %p131
      %p134 = scmp.ne.s32.totalorder %s117, %s133
      %p135 = scmp.eq.s32.totalorder %s20, 0
      %p136 = por %p134, %p135
      %p137 = scmp.le.s32.totalorder 1, %s14
      %p138 = scmp.lt.s32.totalorder %s14, 3
      %p139 = pnand %p137, %p138
      %p140 = pneg %p139
      // Predicated region
      $region9: #{tpu_custom_call.1} parent=5 // pred_check
        _
      $region10: #{tpu_custom_call.1} parent=5 // pred_check_branch
        %142 = sbr.rel (%p139) target = $region12
      $region11: #{tpu_custom_call.1} parent=5 // pred_region
        %s143 = ssub.s32 %s14, 1
        // Predicated region
        $region13: #{tpu_custom_call.1} parent=11 // pred_check
          %p144 = pneg %p61
        $region14: #{tpu_custom_call.1} parent=11 // pred_check_branch
          %146 = sbr.rel (%p144) target = $region16
        $region15: #{tpu_custom_call.1} parent=11 // pred_region
          %s148 = ssub.s32 18432, 18432
          %149 = vsyncadd [#allocation3], %s148
          %s150 = sshll.u32 [#allocation2], 4
          %s151 = int_to_ptr.vmem [resolvable:$true] %s150
          %156 = dma.hbm_to_vmem [thread:$0]  %s1, 18432, %s151, [#allocation3], 192, 192, 12
        $region16: #{tpu_custom_call.1} parent=11 // pred_fallthru
          _
        // Predicated region
        $region17: #{tpu_custom_call.1} parent=11 // pred_check
          %p157 = pneg %p82
        $region18: #{tpu_custom_call.1} parent=11 // pred_check_branch
          %159 = sbr.rel (%p157) target = $region20
        $region19: #{tpu_custom_call.1} parent=11 // pred_region
          _
        $region20: #{tpu_custom_call.1} parent=11 // pred_fallthru
          _
        // Predicated region
        $region21: #{tpu_custom_call.1} parent=11 // pred_check
          %p160 = pneg %p103
        $region22: #{tpu_custom_call.1} parent=11 // pred_check_branch
          %162 = sbr.rel (%p160) target = $region24
        $region23: #{tpu_custom_call.1} parent=11 // pred_region
          _
        $region24: #{tpu_custom_call.1} parent=11 // pred_fallthru
          _
      $region12: #{tpu_custom_call.1} parent=5 // pred_fallthru
        _
      %p163 = scmp.lt.s32.totalorder %s14, 2
      // Predicated region
      $region25: #{tpu_custom_call.1} parent=5 // pred_check
        %p164 = pneg %p163
      $region26: #{tpu_custom_call.1} parent=5 // pred_check_branch
        %166 = sbr.rel (%p164) target = $region28
      $region27: #{tpu_custom_call.1} parent=5 // pred_region
        // Predicated region
        $region29: #{tpu_custom_call.1} parent=27 // pred_check
          %p167 = pneg %p34
        $region30: #{tpu_custom_call.1} parent=27 // pred_check_branch
          %169 = sbr.rel (%p167) target = $region32
        $region31: #{tpu_custom_call.1} parent=27 // pred_region
          %p170 = scmp.lt.s32.totalorder %s14, 1
          %s171 = scalar_select %p170, %s14, 1
          %s172 = smul.addr %s171, 6
          %s173 = smul.addr %s172, 4
          %s174 = scalar_lea.vmem %s0, %s173
        $region32: #{tpu_custom_call.1} parent=27 // pred_fallthru
          _
      $region28: #{tpu_custom_call.1} parent=5 // pred_fallthru
        _
      %p175 = scmp.le.s32.totalorder 1, %s14
      %p176 = scmp.lt.s32.totalorder %s14, 3
      %p177 = pnand %p175, %p176
      %p178 = pneg %p177
      // Predicated region
      $region33: #{tpu_custom_call.1} parent=5 // pred_check
        _
      $region34: #{tpu_custom_call.1} parent=5 // pred_check_branch
        %180 = sbr.rel (%p177) target = $region36
      $region35: #{tpu_custom_call.1} parent=5 // pred_region
        %s181 = ssub.s32 %s14, 1
        // Predicated region
        $region37: #{tpu_custom_call.1} parent=35 // pred_check
          %p182 = pneg %p61
        $region38: #{tpu_custom_call.1} parent=35 // pred_check_branch
          %184 = sbr.rel (%p182) target = $region40
        $region39: #{tpu_custom_call.1} parent=35 // pred_region
          %185 = dma.done [#allocation3], 18432
        $region40: #{tpu_custom_call.1} parent=35 // pred_fallthru
          _
        %p186 = scmp.lt.s32.totalorder %s19, 1
        %s187 = scalar_select %p186, %s19, 1
        %s188 = smul.addr %s187, 6
        %s189 = smul.addr %s188, 4
        %s190 = scalar_lea.vmem %s0, %s189
        %p191 = pneg %p40
        %p192 = pneg %p37
        %p193 = pneg %p61
        %p194 = pneg %p58
        %p195 = pneg %p82
        %p196 = pneg %p79
        %p197 = pneg %p103
        %p198 = pneg %p100
        %p199 = pneg %p129
        %p200 = pneg %p126
        %s201 = sand.u32 %s116, 1
        %s202 = scalar_lea.sflag [#allocation4], %s201
        %s203 = sand.u32 %s116, 1
        %s204 = smul.addr %s203, 8
        %s205 = scalar_lea.vmem [#allocation5], %s204
        %p206 = scmp.lt.s32.totalorder %s19, 1
        %s207 = scalar_select %p206, %s19, 1
        %s208 = smul.addr %s207, 6
        %s209 = smul.addr %s208, 4
        %s210 = scalar_lea.vmem %s0, %s209
        %v212 = vld [vmem:[%s210] sm:$0xff]
        %v213 = vld [vmem:[%s210 + $0x8] sm:$0xff]
        %v214 = vld [vmem:[%s210 + $0x10] sm:$0xff]
        %v215 = vld [vmem:[#allocation2] sm:$0xff]
        %v216 = vld [vmem:[#allocation2 + $0x8] sm:$0xf]
        %v217 = vld [vmem:[#allocation2 + $0xc] sm:$0xff]
        %v218 = vld [vmem:[#allocation2 + $0x14] sm:$0xf]
        %v219 = vld [vmem:[#allocation2 + $0x18] sm:$0xff]
        %v220 = vld [vmem:[#allocation2 + $0x20] sm:$0xf]
        %v221 = vld [vmem:[#allocation2 + $0x24] sm:$0xff]
        %v222 = vld [vmem:[#allocation2 + $0x2c] sm:$0xf]
        %v223 = vld [vmem:[#allocation2 + $0x30] sm:$0xff]
        %v224 = vld [vmem:[#allocation2 + $0x38] sm:$0xf]
        %v225 = vld [vmem:[#allocation2 + $0x3c] sm:$0xff]
        %v226 = vld [vmem:[#allocation2 + $0x44] sm:$0xf]
        %v227 = vld [vmem:[#allocation2 + $0x48] sm:$0xff]
        %v228 = vld [vmem:[#allocation2 + $0x50] sm:$0xf]
        %v229 = vld [vmem:[#allocation2 + $0x54] sm:$0xff]
        %v230 = vld [vmem:[#allocation2 + $0x5c] sm:$0xf]
        %v231 = vld [vmem:[#allocation2 + $0x60] sm:$0xff]
        %v232 = vld [vmem:[#allocation2 + $0x68] sm:$0xf]
        %v233 = vld [vmem:[#allocation2 + $0x6c] sm:$0xff]
        %v234 = vld [vmem:[#allocation2 + $0x74] sm:$0xf]
        %v235 = vld [vmem:[#allocation2 + $0x78] sm:$0xff]
        %v236 = vld [vmem:[#allocation2 + $0x80] sm:$0xf]
        %v237 = vld [vmem:[#allocation2 + $0x84] sm:$0xff]
        %v238 = vld [vmem:[#allocation2 + $0x8c] sm:$0xf]
        %v239 = vld [vmem:[#allocation2 + $0x90] sm:$0xff]
        %v240 = vld [vmem:[#allocation2 + $0x98] sm:$0xf]
        %v241 = vld [vmem:[#allocation2 + $0x9c] sm:$0xff]
        %v242 = vld [vmem:[#allocation2 + $0xa4] sm:$0xf]
        %v243 = vld [vmem:[#allocation2 + $0xa8] sm:$0xff]
        %v244 = vld [vmem:[#allocation2 + $0xb0] sm:$0xf]
        %v245 = vld [vmem:[#allocation2 + $0xb4] sm:$0xff]
        %v246 = vld [vmem:[#allocation2 + $0xbc] sm:$0xf]
        %v247 = vld [vmem:[#allocation2 + $0xc0] sm:$0xff]
        %v248 = vld [vmem:[#allocation2 + $0xc8] sm:$0xf]
        %v249 = vld [vmem:[#allocation2 + $0xcc] sm:$0xff]
        %v250 = vld [vmem:[#allocation2 + $0xd4] sm:$0xf]
        %v251 = vld [vmem:[#allocation2 + $0xd8] sm:$0xff]
        %v252 = vld [vmem:[#allocation2 + $0xe0] sm:$0xf]
        %v253 = vld [vmem:[#allocation2 + $0xe4] sm:$0xff]
        %v254 = vld [vmem:[#allocation2 + $0xec] sm:$0xf]
        %v255 = vld [vmem:[#allocation2 + $0xf0] sm:$0xff]
        %v256 = vld [vmem:[#allocation2 + $0xf8] sm:$0xf]
        %v257 = vld [vmem:[#allocation2 + $0xfc] sm:$0xff]
        %v258 = vld [vmem:[#allocation2 + $0x104] sm:$0xf]
        %v259 = vld [vmem:[#allocation2 + $0x108] sm:$0xff]
        %v260 = vld [vmem:[#allocation2 + $0x110] sm:$0xf]
        %v261 = vld [vmem:[#allocation2 + $0x114] sm:$0xff]
        %v262 = vld [vmem:[#allocation2 + $0x11c] sm:$0xf]
        %v263 = vld [vmem:[#allocation2 + $0x120] sm:$0xff]
        %v264 = vld [vmem:[#allocation2 + $0x128] sm:$0xf]
        %v265 = vld [vmem:[#allocation2 + $0x12c] sm:$0xff]
        %v266 = vld [vmem:[#allocation2 + $0x134] sm:$0xf]
        %v267 = vld [vmem:[#allocation2 + $0x138] sm:$0xff]
        %v268 = vld [vmem:[#allocation2 + $0x140] sm:$0xf]
        %v269 = vld [vmem:[#allocation2 + $0x144] sm:$0xff]
        %v270 = vld [vmem:[#allocation2 + $0x14c] sm:$0xf]
        %v271 = vld [vmem:[#allocation2 + $0x150] sm:$0xff]
        %v272 = vld [vmem:[#allocation2 + $0x158] sm:$0xf]
        %v273 = vld [vmem:[#allocation2 + $0x15c] sm:$0xff]
        %v274 = vld [vmem:[#allocation2 + $0x164] sm:$0xf]
        %v275 = vld [vmem:[#allocation2 + $0x168] sm:$0xff]
        %v276 = vld [vmem:[#allocation2 + $0x170] sm:$0xf]
        %v277 = vld [vmem:[#allocation2 + $0x174] sm:$0xff]
        %v278 = vld [vmem:[#allocation2 + $0x17c] sm:$0xf]
        %v279 = vld [vmem:[#allocation2 + $0x180] sm:$0xff]
        %v280 = vld [vmem:[#allocation2 + $0x188] sm:$0xf]
        %v281 = vld [vmem:[#allocation2 + $0x18c] sm:$0xff]
        %v282 = vld [vmem:[#allocation2 + $0x194] sm:$0xf]
        %v283 = vld [vmem:[#allocation2 + $0x198] sm:$0xff]
        %v284 = vld [vmem:[#allocation2 + $0x1a0] sm:$0xf]
        %v285 = vld [vmem:[#allocation2 + $0x1a4] sm:$0xff]
        %v286 = vld [vmem:[#allocation2 + $0x1ac] sm:$0xf]
        %v287 = vld [vmem:[#allocation2 + $0x1b0] sm:$0xff]
        %v288 = vld [vmem:[#allocation2 + $0x1b8] sm:$0xf]
        %v289 = vld [vmem:[#allocation2 + $0x1bc] sm:$0xff]
        %v290 = vld [vmem:[#allocation2 + $0x1c4] sm:$0xf]
        %v291 = vld [vmem:[#allocation2 + $0x1c8] sm:$0xff]
        %v292 = vld [vmem:[#allocation2 + $0x1d0] sm:$0xf]
        %v293 = vld [vmem:[#allocation2 + $0x1d4] sm:$0xff]
        %v294 = vld [vmem:[#allocation2 + $0x1dc] sm:$0xf]
        %v295 = vld [vmem:[#allocation2 + $0x1e0] sm:$0xff]
        %v296 = vld [vmem:[#allocation2 + $0x1e8] sm:$0xf]
        %v297 = vld [vmem:[#allocation2 + $0x1ec] sm:$0xff]
        %v298 = vld [vmem:[#allocation2 + $0x1f4] sm:$0xf]
        %v299 = vld [vmem:[#allocation2 + $0x1f8] sm:$0xff]
        %v300 = vld [vmem:[#allocation2 + $0x200] sm:$0xf]
        %v301 = vld [vmem:[#allocation2 + $0x204] sm:$0xff]
        %v302 = vld [vmem:[#allocation2 + $0x20c] sm:$0xf]
        %v303 = vld [vmem:[#allocation2 + $0x210] sm:$0xff]
        %v304 = vld [vmem:[#allocation2 + $0x218] sm:$0xf]
        %v305 = vld [vmem:[#allocation2 + $0x21c] sm:$0xff]
        %v306 = vld [vmem:[#allocation2 + $0x224] sm:$0xf]
        %v307 = vld [vmem:[#allocation2 + $0x228] sm:$0xff]
        %v308 = vld [vmem:[#allocation2 + $0x230] sm:$0xf]
        %v309 = vld [vmem:[#allocation2 + $0x234] sm:$0xff]
        %v310 = vld [vmem:[#allocation2 + $0x23c] sm:$0xf]
        %v311 = vld [vmem:[#allocation2 + $0x240] sm:$0xff]
        %v312 = vld [vmem:[#allocation2 + $0x248] sm:$0xf]
        %v313 = vld [vmem:[#allocation2 + $0x24c] sm:$0xff]
        %v314 = vld [vmem:[#allocation2 + $0x254] sm:$0xf]
        %v315 = vld [vmem:[#allocation2 + $0x258] sm:$0xff]
        %v316 = vld [vmem:[#allocation2 + $0x260] sm:$0xf]
        %v317 = vld [vmem:[#allocation2 + $0x264] sm:$0xff]
        %v318 = vld [vmem:[#allocation2 + $0x26c] sm:$0xf]
        %v319 = vld [vmem:[#allocation2 + $0x270] sm:$0xff]
        %v320 = vld [vmem:[#allocation2 + $0x278] sm:$0xf]
        %v321 = vld [vmem:[#allocation2 + $0x27c] sm:$0xff]
        %v322 = vld [vmem:[#allocation2 + $0x284] sm:$0xf]
        %v323 = vld [vmem:[#allocation2 + $0x288] sm:$0xff]
        %v324 = vld [vmem:[#allocation2 + $0x290] sm:$0xf]
        %v325 = vld [vmem:[#allocation2 + $0x294] sm:$0xff]
        %v326 = vld [vmem:[#allocation2 + $0x29c] sm:$0xf]
        %v327 = vld [vmem:[#allocation2 + $0x2a0] sm:$0xff]
        %v328 = vld [vmem:[#allocation2 + $0x2a8] sm:$0xf]
        %v329 = vld [vmem:[#allocation2 + $0x2ac] sm:$0xff]
        %v330 = vld [vmem:[#allocation2 + $0x2b4] sm:$0xf]
        %v331 = vld [vmem:[#allocation2 + $0x2b8] sm:$0xff]
        %v332 = vld [vmem:[#allocation2 + $0x2c0] sm:$0xf]
        %v333 = vld [vmem:[#allocation2 + $0x2c4] sm:$0xff]
        %v334 = vld [vmem:[#allocation2 + $0x2cc] sm:$0xf]
        %v335 = vld [vmem:[#allocation2 + $0x2d0] sm:$0xff]
        %v336 = vld [vmem:[#allocation2 + $0x2d8] sm:$0xf]
        %v337 = vld [vmem:[#allocation2 + $0x2dc] sm:$0xff]
        %v338 = vld [vmem:[#allocation2 + $0x2e4] sm:$0xf]
        %v339 = vld [vmem:[#allocation2 + $0x2e8] sm:$0xff]
        %v340 = vld [vmem:[#allocation2 + $0x2f0] sm:$0xf]
        %v341 = vld [vmem:[#allocation2 + $0x2f4] sm:$0xff]
        %v342 = vld [vmem:[#allocation2 + $0x2fc] sm:$0xf]
        %v343 = vld [vmem:[#allocation2 + $0x300] sm:$0xff]
        %v344 = vld [vmem:[#allocation2 + $0x308] sm:$0xf]
        %v345 = vld [vmem:[#allocation2 + $0x30c] sm:$0xff]
        %v346 = vld [vmem:[#allocation2 + $0x314] sm:$0xf]
        %v347 = vld [vmem:[#allocation2 + $0x318] sm:$0xff]
        %v348 = vld [vmem:[#allocation2 + $0x320] sm:$0xf]
        %v349 = vld [vmem:[#allocation2 + $0x324] sm:$0xff]
        %v350 = vld [vmem:[#allocation2 + $0x32c] sm:$0xf]
        %v351 = vld [vmem:[#allocation2 + $0x330] sm:$0xff]
        %v352 = vld [vmem:[#allocation2 + $0x338] sm:$0xf]
        %v353 = vld [vmem:[#allocation2 + $0x33c] sm:$0xff]
        %v354 = vld [vmem:[#allocation2 + $0x344] sm:$0xf]
        %v355 = vld [vmem:[#allocation2 + $0x348] sm:$0xff]
        %v356 = vld [vmem:[#allocation2 + $0x350] sm:$0xf]
        %v357 = vld [vmem:[#allocation2 + $0x354] sm:$0xff]
        %v358 = vld [vmem:[#allocation2 + $0x35c] sm:$0xf]
        %v359 = vld [vmem:[#allocation2 + $0x360] sm:$0xff]
        %v360 = vld [vmem:[#allocation2 + $0x368] sm:$0xf]
        %v361 = vld [vmem:[#allocation2 + $0x36c] sm:$0xff]
        %v362 = vld [vmem:[#allocation2 + $0x374] sm:$0xf]
        %v363 = vld [vmem:[#allocation2 + $0x378] sm:$0xff]
        %v364 = vld [vmem:[#allocation2 + $0x380] sm:$0xf]
        %v365 = vld [vmem:[#allocation2 + $0x384] sm:$0xff]
        %v366 = vld [vmem:[#allocation2 + $0x38c] sm:$0xf]
        %v367 = vld [vmem:[#allocation2 + $0x390] sm:$0xff]
        %v368 = vld [vmem:[#allocation2 + $0x398] sm:$0xf]
        %v369 = vld [vmem:[#allocation2 + $0x39c] sm:$0xff]
        %v370 = vld [vmem:[#allocation2 + $0x3a4] sm:$0xf]
        %v371 = vld [vmem:[#allocation2 + $0x3a8] sm:$0xff]
        %v372 = vld [vmem:[#allocation2 + $0x3b0] sm:$0xf]
        %v373 = vld [vmem:[#allocation2 + $0x3b4] sm:$0xff]
        %v374 = vld [vmem:[#allocation2 + $0x3bc] sm:$0xf]
        %v375 = vld [vmem:[#allocation2 + $0x3c0] sm:$0xff]
        %v376 = vld [vmem:[#allocation2 + $0x3c8] sm:$0xf]
        %v377 = vld [vmem:[#allocation2 + $0x3cc] sm:$0xff]
        %v378 = vld [vmem:[#allocation2 + $0x3d4] sm:$0xf]
        %v379 = vld [vmem:[#allocation2 + $0x3d8] sm:$0xff]
        %v380 = vld [vmem:[#allocation2 + $0x3e0] sm:$0xf]
        %v381 = vld [vmem:[#allocation2 + $0x3e4] sm:$0xff]
        %v382 = vld [vmem:[#allocation2 + $0x3ec] sm:$0xf]
        %v383 = vld [vmem:[#allocation2 + $0x3f0] sm:$0xff]
        %v384 = vld [vmem:[#allocation2 + $0x3f8] sm:$0xf]
        %v385 = vld [vmem:[#allocation2 + $0x3fc] sm:$0xff]
        %v386 = vld [vmem:[#allocation2 + $0x404] sm:$0xf]
        %v387 = vld [vmem:[#allocation2 + $0x408] sm:$0xff]
        %v388 = vld [vmem:[#allocation2 + $0x410] sm:$0xf]
        %v389 = vld [vmem:[#allocation2 + $0x414] sm:$0xff]
        %v390 = vld [vmem:[#allocation2 + $0x41c] sm:$0xf]
        %v391 = vld [vmem:[#allocation2 + $0x420] sm:$0xff]
        %v392 = vld [vmem:[#allocation2 + $0x428] sm:$0xf]
        %v393 = vld [vmem:[#allocation2 + $0x42c] sm:$0xff]
        %v394 = vld [vmem:[#allocation2 + $0x434] sm:$0xf]
        %v395 = vld [vmem:[#allocation2 + $0x438] sm:$0xff]
        %v396 = vld [vmem:[#allocation2 + $0x440] sm:$0xf]
        %v397 = vld [vmem:[#allocation2 + $0x444] sm:$0xff]
        %v398 = vld [vmem:[#allocation2 + $0x44c] sm:$0xf]
        %v399 = vld [vmem:[#allocation2 + $0x450] sm:$0xff]
        %v400 = vld [vmem:[#allocation2 + $0x458] sm:$0xf]
        %v401 = vld [vmem:[#allocation2 + $0x45c] sm:$0xff]
        %v402 = vld [vmem:[#allocation2 + $0x464] sm:$0xf]
        %v403 = vld [vmem:[#allocation2 + $0x468] sm:$0xff]
        %v404 = vld [vmem:[#allocation2 + $0x470] sm:$0xf]
        %v405 = vld [vmem:[#allocation2 + $0x474] sm:$0xff]
        %v406 = vld [vmem:[#allocation2 + $0x47c] sm:$0xf]
        %v407 = vld [vmem:[%s2] sm:$0x7]
        %v409 = vlaneseq
        %v410 = vshrl.u32 %v409, 7
        %v411 = vsub.s32 0, %v410
        %v412 = vrot.slane %v407, %v411
        %v413 = vlaneseq
        %v414 = vshrl.u32 %v413, 7
        %v415 = vsub.s32 1, %v414
        %v416 = vrot.slane %v407, %v415
        %v417 = vlaneseq
        %v418 = vshrl.u32 %v417, 7
        %v419 = vsub.s32 2, %v418
        %v420 = vrot.slane %v407, %v419
        %v427 = vunpack.c.l.b16 %v212
        %v428 = vunpack.c.h.b16 %v212
        %v429 = vunpack.c.l.b16 %v213
        %v430 = vunpack.c.h.b16 %v213
        %v431 = vunpack.c.l.b16 %v214
        %v432 = vunpack.c.h.b16 %v214
        %v433 = vpack.c.b16 %v427, %v427
        %v434 = vpack.c.b16 %v428, %v428
        %v435 = vpack.c.b16 %v429, %v429
        %v436 = vpack.c.b16 %v430, %v430
        %v437 = vpack.c.b16 %v431, %v431
        %v438 = vpack.c.b16 %v432, %v432
        %v637 = vunpack.c.l.b16 %v215
        %v638 = vunpack.c.h.b16 %v215
        %v639 = vunpack.c.l.b16 %v216
        %v640 = vunpack.c.l.b16 %v217
        %v641 = vunpack.c.h.b16 %v217
        %v642 = vunpack.c.l.b16 %v218
        %v643 = vunpack.c.l.b16 %v219
        %v644 = vunpack.c.h.b16 %v219
        %v645 = vunpack.c.l.b16 %v220
        %v646 = vunpack.c.l.b16 %v221
        %v647 = vunpack.c.h.b16 %v221
        %v648 = vunpack.c.l.b16 %v222
        %v649 = vunpack.c.l.b16 %v223
        %v650 = vunpack.c.h.b16 %v223
        %v651 = vunpack.c.l.b16 %v224
        %v652 = vunpack.c.l.b16 %v225
        %v653 = vunpack.c.h.b16 %v225
        %v654 = vunpack.c.l.b16 %v226
        %v655 = vunpack.c.l.b16 %v227
        %v656 = vunpack.c.h.b16 %v227
        %v657 = vunpack.c.l.b16 %v228
        %v658 = vunpack.c.l.b16 %v229
        %v659 = vunpack.c.h.b16 %v229
        %v660 = vunpack.c.l.b16 %v230
        %v661 = vunpack.c.l.b16 %v231
        %v662 = vunpack.c.h.b16 %v231
        %v663 = vunpack.c.l.b16 %v232
        %v664 = vunpack.c.l.b16 %v233
        %v665 = vunpack.c.h.b16 %v233
        %v666 = vunpack.c.l.b16 %v234
        %v667 = vunpack.c.l.b16 %v235
        %v668 = vunpack.c.h.b16 %v235
        %v669 = vunpack.c.l.b16 %v236
        %v670 = vunpack.c.l.b16 %v237
        %v671 = vunpack.c.h.b16 %v237
        %v672 = vunpack.c.l.b16 %v238
        %v673 = vunpack.c.l.b16 %v239
        %v674 = vunpack.c.h.b16 %v239
        %v675 = vunpack.c.l.b16 %v240
        %v676 = vunpack.c.l.b16 %v241
        %v677 = vunpack.c.h.b16 %v241
        %v678 = vunpack.c.l.b16 %v242
        %v679 = vunpack.c.l.b16 %v243
        %v680 = vunpack.c.h.b16 %v243
        %v681 = vunpack.c.l.b16 %v244
        %v682 = vunpack.c.l.b16 %v245
        %v683 = vunpack.c.h.b16 %v245
        %v684 = vunpack.c.l.b16 %v246
        %v685 = vunpack.c.l.b16 %v247
        %v686 = vunpack.c.h.b16 %v247
        %v687 = vunpack.c.l.b16 %v248
        %v688 = vunpack.c.l.b16 %v249
        %v689 = vunpack.c.h.b16 %v249
        %v690 = vunpack.c.l.b16 %v250
        %v691 = vunpack.c.l.b16 %v251
        %v692 = vunpack.c.h.b16 %v251
        %v693 = vunpack.c.l.b16 %v252
        %v694 = vunpack.c.l.b16 %v253
        %v695 = vunpack.c.h.b16 %v253
        %v696 = vunpack.c.l.b16 %v254
        %v697 = vunpack.c.l.b16 %v255
        %v698 = vunpack.c.h.b16 %v255
        %v699 = vunpack.c.l.b16 %v256
        %v700 = vunpack.c.l.b16 %v257
        %v701 = vunpack.c.h.b16 %v257
        %v702 = vunpack.c.l.b16 %v258
        %v703 = vunpack.c.l.b16 %v259
        %v704 = vunpack.c.h.b16 %v259
        %v705 = vunpack.c.l.b16 %v260
        %v706 = vunpack.c.l.b16 %v261
        %v707 = vunpack.c.h.b16 %v261
        %v708 = vunpack.c.l.b16 %v262
        %v709 = vunpack.c.l.b16 %v263
        %v710 = vunpack.c.h.b16 %v263
        %v711 = vunpack.c.l.b16 %v264
        %v712 = vunpack.c.l.b16 %v265
        %v713 = vunpack.c.h.b16 %v265
        %v714 = vunpack.c.l.b16 %v266
        %v715 = vunpack.c.l.b16 %v267
        %v716 = vunpack.c.h.b16 %v267
        %v717 = vunpack.c.l.b16 %v268
        %v718 = vunpack.c.l.b16 %v269
        %v719 = vunpack.c.h.b16 %v269
        %v720 = vunpack.c.l.b16 %v270
        %v721 = vunpack.c.l.b16 %v271
        %v722 = vunpack.c.h.b16 %v271
        %v723 = vunpack.c.l.b16 %v272
        %v724 = vunpack.c.l.b16 %v273
        %v725 = vunpack.c.h.b16 %v273
        %v726 = vunpack.c.l.b16 %v274
        %v727 = vunpack.c.l.b16 %v275
        %v728 = vunpack.c.h.b16 %v275
        %v729 = vunpack.c.l.b16 %v276
        %v730 = vunpack.c.l.b16 %v277
        %v731 = vunpack.c.h.b16 %v277
        %v732 = vunpack.c.l.b16 %v278
        %v733 = vunpack.c.l.b16 %v279
        %v734 = vunpack.c.h.b16 %v279
        %v735 = vunpack.c.l.b16 %v280
        %v736 = vunpack.c.l.b16 %v281
        %v737 = vunpack.c.h.b16 %v281
        %v738 = vunpack.c.l.b16 %v282
        %v739 = vunpack.c.l.b16 %v283
        %v740 = vunpack.c.h.b16 %v283
        %v741 = vunpack.c.l.b16 %v284
        %v742 = vunpack.c.l.b16 %v285
        %v743 = vunpack.c.h.b16 %v285
        %v744 = vunpack.c.l.b16 %v286
        %v745 = vunpack.c.l.b16 %v287
        %v746 = vunpack.c.h.b16 %v287
        %v747 = vunpack.c.l.b16 %v288
        %v748 = vunpack.c.l.b16 %v289
        %v749 = vunpack.c.h.b16 %v289
        %v750 = vunpack.c.l.b16 %v290
        %v751 = vunpack.c.l.b16 %v291
        %v752 = vunpack.c.h.b16 %v291
        %v753 = vunpack.c.l.b16 %v292
        %v754 = vunpack.c.l.b16 %v293
        %v755 = vunpack.c.h.b16 %v293
        %v756 = vunpack.c.l.b16 %v294
        %v757 = vunpack.c.l.b16 %v295
        %v758 = vunpack.c.h.b16 %v295
        %v759 = vunpack.c.l.b16 %v296
        %v760 = vunpack.c.l.b16 %v297
        %v761 = vunpack.c.h.b16 %v297
        %v762 = vunpack.c.l.b16 %v298
        %v763 = vunpack.c.l.b16 %v299
        %v764 = vunpack.c.h.b16 %v299
        %v765 = vunpack.c.l.b16 %v300
        %v766 = vunpack.c.l.b16 %v301
        %v767 = vunpack.c.h.b16 %v301
        %v768 = vunpack.c.l.b16 %v302
        %v769 = vunpack.c.l.b16 %v303
        %v770 = vunpack.c.h.b16 %v303
        %v771 = vunpack.c.l.b16 %v304
        %v772 = vunpack.c.l.b16 %v305
        %v773 = vunpack.c.h.b16 %v305
        %v774 = vunpack.c.l.b16 %v306
        %v775 = vunpack.c.l.b16 %v307
        %v776 = vunpack.c.h.b16 %v307
        %v777 = vunpack.c.l.b16 %v308
        %v778 = vunpack.c.l.b16 %v309
        %v779 = vunpack.c.h.b16 %v309
        %v780 = vunpack.c.l.b16 %v310
        %v781 = vunpack.c.l.b16 %v311
        %v782 = vunpack.c.h.b16 %v311
        %v783 = vunpack.c.l.b16 %v312
        %v784 = vunpack.c.l.b16 %v313
        %v785 = vunpack.c.h.b16 %v313
        %v786 = vunpack.c.l.b16 %v314
        %v787 = vunpack.c.l.b16 %v315
        %v788 = vunpack.c.h.b16 %v315
        %v789 = vunpack.c.l.b16 %v316
        %v790 = vunpack.c.l.b16 %v317
        %v791 = vunpack.c.h.b16 %v317
        %v792 = vunpack.c.l.b16 %v318
        %v793 = vunpack.c.l.b16 %v319
        %v794 = vunpack.c.h.b16 %v319
        %v795 = vunpack.c.l.b16 %v320
        %v796 = vunpack.c.l.b16 %v321
        %v797 = vunpack.c.h.b16 %v321
        %v798 = vunpack.c.l.b16 %v322
        %v799 = vunpack.c.l.b16 %v323
        %v800 = vunpack.c.h.b16 %v323
        %v801 = vunpack.c.l.b16 %v324
        %v802 = vunpack.c.l.b16 %v325
        %v803 = vunpack.c.h.b16 %v325
        %v804 = vunpack.c.l.b16 %v326
        %v805 = vunpack.c.l.b16 %v327
        %v806 = vunpack.c.h.b16 %v327
        %v807 = vunpack.c.l.b16 %v328
        %v808 = vunpack.c.l.b16 %v329
        %v809 = vunpack.c.h.b16 %v329
        %v810 = vunpack.c.l.b16 %v330
        %v811 = vunpack.c.l.b16 %v331
        %v812 = vunpack.c.h.b16 %v331
        %v813 = vunpack.c.l.b16 %v332
        %v814 = vunpack.c.l.b16 %v333
        %v815 = vunpack.c.h.b16 %v333
        %v816 = vunpack.c.l.b16 %v334
        %v817 = vunpack.c.l.b16 %v335
        %v818 = vunpack.c.h.b16 %v335
        %v819 = vunpack.c.l.b16 %v336
        %v820 = vunpack.c.l.b16 %v337
        %v821 = vunpack.c.h.b16 %v337
        %v822 = vunpack.c.l.b16 %v338
        %v823 = vunpack.c.l.b16 %v339
        %v824 = vunpack.c.h.b16 %v339
        %v825 = vunpack.c.l.b16 %v340
        %v826 = vunpack.c.l.b16 %v341
        %v827 = vunpack.c.h.b16 %v341
        %v828 = vunpack.c.l.b16 %v342
        %v829 = vunpack.c.l.b16 %v343
        %v830 = vunpack.c.h.b16 %v343
        %v831 = vunpack.c.l.b16 %v344
        %v832 = vunpack.c.l.b16 %v345
        %v833 = vunpack.c.h.b16 %v345
        %v834 = vunpack.c.l.b16 %v346
        %v835 = vunpack.c.l.b16 %v347
        %v836 = vunpack.c.h.b16 %v347
        %v837 = vunpack.c.l.b16 %v348
        %v838 = vunpack.c.l.b16 %v349
        %v839 = vunpack.c.h.b16 %v349
        %v840 = vunpack.c.l.b16 %v350
        %v841 = vunpack.c.l.b16 %v351
        %v842 = vunpack.c.h.b16 %v351
        %v843 = vunpack.c.l.b16 %v352
        %v844 = vunpack.c.l.b16 %v353
        %v845 = vunpack.c.h.b16 %v353
        %v846 = vunpack.c.l.b16 %v354
        %v847 = vunpack.c.l.b16 %v355
        %v848 = vunpack.c.h.b16 %v355
        %v849 = vunpack.c.l.b16 %v356
        %v850 = vunpack.c.l.b16 %v357
        %v851 = vunpack.c.h.b16 %v357
        %v852 = vunpack.c.l.b16 %v358
        %v853 = vunpack.c.l.b16 %v359
        %v854 = vunpack.c.h.b16 %v359
        %v855 = vunpack.c.l.b16 %v360
        %v856 = vunpack.c.l.b16 %v361
        %v857 = vunpack.c.h.b16 %v361
        %v858 = vunpack.c.l.b16 %v362
        %v859 = vunpack.c.l.b16 %v363
        %v860 = vunpack.c.h.b16 %v363
        %v861 = vunpack.c.l.b16 %v364
        %v862 = vunpack.c.l.b16 %v365
        %v863 = vunpack.c.h.b16 %v365
        %v864 = vunpack.c.l.b16 %v366
        %v865 = vunpack.c.l.b16 %v367
        %v866 = vunpack.c.h.b16 %v367
        %v867 = vunpack.c.l.b16 %v368
        %v868 = vunpack.c.l.b16 %v369
        %v869 = vunpack.c.h.b16 %v369
        %v870 = vunpack.c.l.b16 %v370
        %v871 = vunpack.c.l.b16 %v371
        %v872 = vunpack.c.h.b16 %v371
        %v873 = vunpack.c.l.b16 %v372
        %v874 = vunpack.c.l.b16 %v373
        %v875 = vunpack.c.h.b16 %v373
        %v876 = vunpack.c.l.b16 %v374
        %v877 = vunpack.c.l.b16 %v375
        %v878 = vunpack.c.h.b16 %v375
        %v879 = vunpack.c.l.b16 %v376
        %v880 = vunpack.c.l.b16 %v377
        %v881 = vunpack.c.h.b16 %v377
        %v882 = vunpack.c.l.b16 %v378
        %v883 = vunpack.c.l.b16 %v379
        %v884 = vunpack.c.h.b16 %v379
        %v885 = vunpack.c.l.b16 %v380
        %v886 = vunpack.c.l.b16 %v381
        %v887 = vunpack.c.h.b16 %v381
        %v888 = vunpack.c.l.b16 %v382
        %v889 = vunpack.c.l.b16 %v383
        %v890 = vunpack.c.h.b16 %v383
        %v891 = vunpack.c.l.b16 %v384
        %v892 = vunpack.c.l.b16 %v385
        %v893 = vunpack.c.h.b16 %v385
        %v894 = vunpack.c.l.b16 %v386
        %v895 = vunpack.c.l.b16 %v387
        %v896 = vunpack.c.h.b16 %v387
        %v897 = vunpack.c.l.b16 %v388
        %v898 = vunpack.c.l.b16 %v389
        %v899 = vunpack.c.h.b16 %v389
        %v900 = vunpack.c.l.b16 %v390
        %v901 = vunpack.c.l.b16 %v391
        %v902 = vunpack.c.h.b16 %v391
        %v903 = vunpack.c.l.b16 %v392
        %v904 = vunpack.c.l.b16 %v393
        %v905 = vunpack.c.h.b16 %v393
        %v906 = vunpack.c.l.b16 %v394
        %v907 = vunpack.c.l.b16 %v395
        %v908 = vunpack.c.h.b16 %v395
        %v909 = vunpack.c.l.b16 %v396
        %v910 = vunpack.c.l.b16 %v397
        %v911 = vunpack.c.h.b16 %v397
        %v912 = vunpack.c.l.b16 %v398
        %v913 = vunpack.c.l.b16 %v399
        %v914 = vunpack.c.h.b16 %v399
        %v915 = vunpack.c.l.b16 %v400
        %v916 = vunpack.c.l.b16 %v401
        %v917 = vunpack.c.h.b16 %v401
        %v918 = vunpack.c.l.b16 %v402
        %v919 = vunpack.c.l.b16 %v403
        %v920 = vunpack.c.h.b16 %v403
        %v921 = vunpack.c.l.b16 %v404
        %v922 = vunpack.c.l.b16 %v405
        %v923 = vunpack.c.h.b16 %v405
        %v924 = vunpack.c.l.b16 %v406
        %v925 = vpack.c.b16 %v640, %v637
        %v926 = vpack.c.b16 %v641, %v638
        %v927 = vpack.c.b16 %v642, %v639
        %v928 = vpack.c.b16 %v646, %v643
        %v929 = vpack.c.b16 %v647, %v644
        %v930 = vpack.c.b16 %v648, %v645
        %v931 = vpack.c.b16 %v652, %v649
        %v932 = vpack.c.b16 %v653, %v650
        %v933 = vpack.c.b16 %v654, %v651
        %v934 = vpack.c.b16 %v658, %v655
        %v935 = vpack.c.b16 %v659, %v656
        %v936 = vpack.c.b16 %v660, %v657
        %v937 = vpack.c.b16 %v664, %v661
        %v938 = vpack.c.b16 %v665, %v662
        %v939 = vpack.c.b16 %v666, %v663
        %v940 = vpack.c.b16 %v670, %v667
        %v941 = vpack.c.b16 %v671, %v668
        %v942 = vpack.c.b16 %v672, %v669
        %v943 = vpack.c.b16 %v676, %v673
        %v944 = vpack.c.b16 %v677, %v674
        %v945 = vpack.c.b16 %v678, %v675
        %v946 = vpack.c.b16 %v682, %v679
        %v947 = vpack.c.b16 %v683, %v680
        %v948 = vpack.c.b16 %v684, %v681
        %v949 = vpack.c.b16 %v688, %v685
        %v950 = vpack.c.b16 %v689, %v686
        %v951 = vpack.c.b16 %v690, %v687
        %v952 = vpack.c.b16 %v694, %v691
        %v953 = vpack.c.b16 %v695, %v692
        %v954 = vpack.c.b16 %v696, %v693
        %v955 = vpack.c.b16 %v700, %v697
        %v956 = vpack.c.b16 %v701, %v698
        %v957 = vpack.c.b16 %v702, %v699
        %v958 = vpack.c.b16 %v706, %v703
        %v959 = vpack.c.b16 %v707, %v704
        %v960 = vpack.c.b16 %v708, %v705
        %v961 = vpack.c.b16 %v712, %v709
        %v962 = vpack.c.b16 %v713, %v710
        %v963 = vpack.c.b16 %v714, %v711
        %v964 = vpack.c.b16 %v718, %v715
        %v965 = vpack.c.b16 %v719, %v716
        %v966 = vpack.c.b16 %v720, %v717
        %v967 = vpack.c.b16 %v724, %v721
        %v968 = vpack.c.b16 %v725, %v722
        %v969 = vpack.c.b16 %v726, %v723
        %v970 = vpack.c.b16 %v730, %v727
        %v971 = vpack.c.b16 %v731, %v728
        %v972 = vpack.c.b16 %v732, %v729
        %v973 = vpack.c.b16 %v736, %v733
        %v974 = vpack.c.b16 %v737, %v734
        %v975 = vpack.c.b16 %v738, %v735
        %v976 = vpack.c.b16 %v742, %v739
        %v977 = vpack.c.b16 %v743, %v740
        %v978 = vpack.c.b16 %v744, %v741
        %v979 = vpack.c.b16 %v748, %v745
        %v980 = vpack.c.b16 %v749, %v746
        %v981 = vpack.c.b16 %v750, %v747
        %v982 = vpack.c.b16 %v754, %v751
        %v983 = vpack.c.b16 %v755, %v752
        %v984 = vpack.c.b16 %v756, %v753
        %v985 = vpack.c.b16 %v760, %v757
        %v986 = vpack.c.b16 %v761, %v758
        %v987 = vpack.c.b16 %v762, %v759
        %v988 = vpack.c.b16 %v766, %v763
        %v989 = vpack.c.b16 %v767, %v764
        %v990 = vpack.c.b16 %v768, %v765
        %v991 = vpack.c.b16 %v772, %v769
        %v992 = vpack.c.b16 %v773, %v770
        %v993 = vpack.c.b16 %v774, %v771
        %v994 = vpack.c.b16 %v778, %v775
        %v995 = vpack.c.b16 %v779, %v776
        %v996 = vpack.c.b16 %v780, %v777
        %v997 = vpack.c.b16 %v784, %v781
        %v998 = vpack.c.b16 %v785, %v782
        %v999 = vpack.c.b16 %v786, %v783
        %v1000 = vpack.c.b16 %v790, %v787
        %v1001 = vpack.c.b16 %v791, %v788
        %v1002 = vpack.c.b16 %v792, %v789
        %v1003 = vpack.c.b16 %v796, %v793
        %v1004 = vpack.c.b16 %v797, %v794
        %v1005 = vpack.c.b16 %v798, %v795
        %v1006 = vpack.c.b16 %v802, %v799
        %v1007 = vpack.c.b16 %v803, %v800
        %v1008 = vpack.c.b16 %v804, %v801
        %v1009 = vpack.c.b16 %v808, %v805
        %v1010 = vpack.c.b16 %v809, %v806
        %v1011 = vpack.c.b16 %v810, %v807
        %v1012 = vpack.c.b16 %v814, %v811
        %v1013 = vpack.c.b16 %v815, %v812
        %v1014 = vpack.c.b16 %v816, %v813
        %v1015 = vpack.c.b16 %v820, %v817
        %v1016 = vpack.c.b16 %v821, %v818
        %v1017 = vpack.c.b16 %v822, %v819
        %v1018 = vpack.c.b16 %v826, %v823
        %v1019 = vpack.c.b16 %v827, %v824
        %v1020 = vpack.c.b16 %v828, %v825
        %v1021 = vpack.c.b16 %v832, %v829
        %v1022 = vpack.c.b16 %v833, %v830
        %v1023 = vpack.c.b16 %v834, %v831
        %v1024 = vpack.c.b16 %v838, %v835
        %v1025 = vpack.c.b16 %v839, %v836
        %v1026 = vpack.c.b16 %v840, %v837
        %v1027 = vpack.c.b16 %v844, %v841
        %v1028 = vpack.c.b16 %v845, %v842
        %v1029 = vpack.c.b16 %v846, %v843
        %v1030 = vpack.c.b16 %v850, %v847
        %v1031 = vpack.c.b16 %v851, %v848
        %v1032 = vpack.c.b16 %v852, %v849
        %v1033 = vpack.c.b16 %v856, %v853
        %v1034 = vpack.c.b16 %v857, %v854
        %v1035 = vpack.c.b16 %v858, %v855
        %v1036 = vpack.c.b16 %v862, %v859
        %v1037 = vpack.c.b16 %v863, %v860
        %v1038 = vpack.c.b16 %v864, %v861
        %v1039 = vpack.c.b16 %v868, %v865
        %v1040 = vpack.c.b16 %v869, %v866
        %v1041 = vpack.c.b16 %v870, %v867
        %v1042 = vpack.c.b16 %v874, %v871
        %v1043 = vpack.c.b16 %v875, %v872
        %v1044 = vpack.c.b16 %v876, %v873
        %v1045 = vpack.c.b16 %v880, %v877
        %v1046 = vpack.c.b16 %v881, %v878
        %v1047 = vpack.c.b16 %v882, %v879
        %v1048 = vpack.c.b16 %v886, %v883
        %v1049 = vpack.c.b16 %v887, %v884
        %v1050 = vpack.c.b16 %v888, %v885
        %v1051 = vpack.c.b16 %v892, %v889
        %v1052 = vpack.c.b16 %v893, %v890
        %v1053 = vpack.c.b16 %v894, %v891
        %v1054 = vpack.c.b16 %v898, %v895
        %v1055 = vpack.c.b16 %v899, %v896
        %v1056 = vpack.c.b16 %v900, %v897
        %v1057 = vpack.c.b16 %v904, %v901
        %v1058 = vpack.c.b16 %v905, %v902
        %v1059 = vpack.c.b16 %v906, %v903
        %v1060 = vpack.c.b16 %v910, %v907
        %v1061 = vpack.c.b16 %v911, %v908
        %v1062 = vpack.c.b16 %v912, %v909
        %v1063 = vpack.c.b16 %v916, %v913
        %v1064 = vpack.c.b16 %v917, %v914
        %v1065 = vpack.c.b16 %v918, %v915
        %v1066 = vpack.c.b16 %v922, %v919
        %v1067 = vpack.c.b16 %v923, %v920
        %v1068 = vpack.c.b16 %v924, %v921
        %1213 = vmatprep.subr.bf16.mxu0 %v926
        %1214 = vmatpush1.bf16.msra.mxu0 %v925
        %1215 = vmatprep.subr.bf16.mxu0 %v929
        %1216 = vmatpush1.bf16.msra.mxu0 %v928
        %1217 = vmatprep.subr.bf16.mxu0 %v932
        %1218 = vmatpush1.bf16.msra.mxu0 %v931
        %1219 = vmatprep.subr.bf16.mxu0 %v935
        %1220 = vmatpush1.bf16.msra.mxu0 %v934
        %1221 = vmatprep.subr.bf16.mxu0 %v938
        %1222 = vmatpush1.bf16.msra.mxu0 %v937
        %1223 = vmatprep.subr.bf16.mxu0 %v941
        %1224 = vmatpush1.bf16.msra.mxu0 %v940
        %1225 = vmatprep.subr.bf16.mxu0 %v944
        %1226 = vmatpush1.bf16.msra.mxu0 %v943
        %1227 = vmatprep.subr.bf16.mxu0 %v947
        %1228 = vmatpush1.bf16.msra.mxu0 %v946
        %1229 = vmatprep.subr.bf16.mxu0 %v950
        %1230 = vmatpush1.bf16.msra.mxu0 %v949
        %1231 = vmatprep.subr.bf16.mxu0 %v953
        %1232 = vmatpush1.bf16.msra.mxu0 %v952
        %1233 = vmatprep.subr.bf16.mxu0 %v956
        %1234 = vmatpush1.bf16.msra.mxu0 %v955
        %1235 = vmatprep.subr.bf16.mxu0 %v959
        %1236 = vmatpush1.bf16.msra.mxu0 %v958
        %1237 = vmatprep.subr.bf16.mxu0 %v962
        %1238 = vmatpush1.bf16.msra.mxu0 %v961
        %1239 = vmatprep.subr.bf16.mxu0 %v965
        %1240 = vmatpush1.bf16.msra.mxu0 %v964
        %1241 = vmatprep.subr.bf16.mxu0 %v968
        %1242 = vmatpush1.bf16.msra.mxu0 %v967
        %1243 = vmatprep.subr.bf16.mxu0 %v971
        %1244 = vmatpush1.bf16.msra.mxu0 %v970
        %1245 = vmatprep.mubr.bf16.mxu0 %v434
        %1246 = vmatmul.mubr.bf16.gmra.mrb[0].mxu0 %v433
        %v1247 = vpop.f32.mrb[0].mxu0
        %v1248 = vadd.f32 %v412, %v1247
        %v1249 = vpop.f32.mrb[0].mxu0
        %v1250 = vadd.f32 %v416, %v1249
        %v1251 = vpop.f32.mrb[0].mxu0
        %v1252 = vpop.f32.mrb[0].mxu0
        %1253 = vdwg.mxu0
        %1254 = vmatprep.subr.bf16.mxu0 %v974
        %1255 = vmatpush1.bf16.msra.mxu0 %v973
        %1256 = vmatprep.subr.bf16.mxu0 %v977
        %1257 = vmatpush1.bf16.msra.mxu0 %v976
        %1258 = vmatprep.subr.bf16.mxu0 %v980
        %1259 = vmatpush1.bf16.msra.mxu0 %v979
        %1260 = vmatprep.subr.bf16.mxu0 %v983
        %1261 = vmatpush1.bf16.msra.mxu0 %v982
        %1262 = vmatprep.subr.bf16.mxu0 %v986
        %1263 = vmatpush1.bf16.msra.mxu0 %v985
        %1264 = vmatprep.subr.bf16.mxu0 %v989
        %1265 = vmatpush1.bf16.msra.mxu0 %v988
        %1266 = vmatprep.subr.bf16.mxu0 %v992
        %1267 = vmatpush1.bf16.msra.mxu0 %v991
        %1268 = vmatprep.subr.bf16.mxu0 %v995
        %1269 = vmatpush1.bf16.msra.mxu0 %v994
        %1270 = vmatprep.subr.bf16.mxu0 %v998
        %1271 = vmatpush1.bf16.msra.mxu0 %v997
        %1272 = vmatprep.subr.bf16.mxu0 %v1001
        %1273 = vmatpush1.bf16.msra.mxu0 %v1000
        %1274 = vmatprep.subr.bf16.mxu0 %v1004
        %1275 = vmatpush1.bf16.msra.mxu0 %v1003
        %1276 = vmatprep.subr.bf16.mxu0 %v1007
        %1277 = vmatpush1.bf16.msra.mxu0 %v1006
        %1278 = vmatprep.subr.bf16.mxu0 %v1010
        %1279 = vmatpush1.bf16.msra.mxu0 %v1009
        %1280 = vmatprep.subr.bf16.mxu0 %v1013
        %1281 = vmatpush1.bf16.msra.mxu0 %v1012
        %1282 = vmatprep.subr.bf16.mxu0 %v1016
        %1283 = vmatpush1.bf16.msra.mxu0 %v1015
        %1284 = vmatprep.subr.bf16.mxu0 %v1019
        %1285 = vmatpush1.bf16.msra.mxu0 %v1018
        %1286 = vmatprep.mubr.bf16.mxu0 %v436
        %1287 = vmatmul.mubr.bf16.gmra.mrb[0].mxu0 %v435
        %v1288 = vpop.f32.mrb[0].mxu0
        %v1289 = vadd.f32 %v1248, %v1288
        %v1290 = vpop.f32.mrb[0].mxu0
        %v1291 = vadd.f32 %v1250, %v1290
        %v1292 = vpop.f32.mrb[0].mxu0
        %v1293 = vpop.f32.mrb[0].mxu0
        %1294 = vdwg.mxu0
        %1295 = vmatprep.subr.bf16.mxu0 %v1022
        %1296 = vmatpush1.bf16.msra.mxu0 %v1021
        %1297 = vmatprep.subr.bf16.mxu0 %v1025
        %1298 = vmatpush1.bf16.msra.mxu0 %v1024
        %1299 = vmatprep.subr.bf16.mxu0 %v1028
        %1300 = vmatpush1.bf16.msra.mxu0 %v1027
        %1301 = vmatprep.subr.bf16.mxu0 %v1031
        %1302 = vmatpush1.bf16.msra.mxu0 %v1030
        %1303 = vmatprep.subr.bf16.mxu0 %v1034
        %1304 = vmatpush1.bf16.msra.mxu0 %v1033
        %1305 = vmatprep.subr.bf16.mxu0 %v1037
        %1306 = vmatpush1.bf16.msra.mxu0 %v1036
        %1307 = vmatprep.subr.bf16.mxu0 %v1040
        %1308 = vmatpush1.bf16.msra.mxu0 %v1039
        %1309 = vmatprep.subr.bf16.mxu0 %v1043
        %1310 = vmatpush1.bf16.msra.mxu0 %v1042
        %1311 = vmatprep.subr.bf16.mxu0 %v1046
        %1312 = vmatpush1.bf16.msra.mxu0 %v1045
        %1313 = vmatprep.subr.bf16.mxu0 %v1049
        %1314 = vmatpush1.bf16.msra.mxu0 %v1048
        %1315 = vmatprep.subr.bf16.mxu0 %v1052
        %1316 = vmatpush1.bf16.msra.mxu0 %v1051
        %1317 = vmatprep.subr.bf16.mxu0 %v1055
        %1318 = vmatpush1.bf16.msra.mxu0 %v1054
        %1319 = vmatprep.subr.bf16.mxu0 %v1058
        %1320 = vmatpush1.bf16.msra.mxu0 %v1057
        %1321 = vmatprep.subr.bf16.mxu0 %v1061
        %1322 = vmatpush1.bf16.msra.mxu0 %v1060
        %1323 = vmatprep.subr.bf16.mxu0 %v1064
        %1324 = vmatpush1.bf16.msra.mxu0 %v1063
        %1325 = vmatprep.subr.bf16.mxu0 %v1067
        %1326 = vmatpush1.bf16.msra.mxu0 %v1066
        %1327 = vmatprep.mubr.bf16.mxu0 %v438
        %1328 = vmatmul.mubr.bf16.gmra.mrb[0].mxu0 %v437
        %v1329 = vpop.f32.mrb[0].mxu0
        %v1330 = vadd.f32 %v1289, %v1329
        %v1331 = vpop.f32.mrb[0].mxu0
        %v1332 = vadd.f32 %v1291, %v1331
        %v1333 = vpop.f32.mrb[0].mxu0
        %v1334 = vpop.f32.mrb[0].mxu0
        %1335 = vdwg.mxu0
        %1336 = vmatprep.subr.bf16.mxu0 0
        %1337 = vmatpush1.bf16.msra.mxu0 %v927
        %1338 = vmatprep.subr.bf16.mxu0 0
        %1339 = vmatpush1.bf16.msra.mxu0 %v930
        %1340 = vmatprep.subr.bf16.mxu0 0
        %1341 = vmatpush1.bf16.msra.mxu0 %v933
        %1342 = vmatprep.subr.bf16.mxu0 0
        %1343 = vmatpush1.bf16.msra.mxu0 %v936
        %1344 = vmatprep.subr.bf16.mxu0 0
        %1345 = vmatpush1.bf16.msra.mxu0 %v939
        %1346 = vmatprep.subr.bf16.mxu0 0
        %1347 = vmatpush1.bf16.msra.mxu0 %v942
        %1348 = vmatprep.subr.bf16.mxu0 0
        %1349 = vmatpush1.bf16.msra.mxu0 %v945
        %1350 = vmatprep.subr.bf16.mxu0 0
        %1351 = vmatpush1.bf16.msra.mxu0 %v948
        %1352 = vmatprep.subr.bf16.mxu0 0
        %1353 = vmatpush1.bf16.msra.mxu0 %v951
        %1354 = vmatprep.subr.bf16.mxu0 0
        %1355 = vmatpush1.bf16.msra.mxu0 %v954
        %1356 = vmatprep.subr.bf16.mxu0 0
        %1357 = vmatpush1.bf16.msra.mxu0 %v957
        %1358 = vmatprep.subr.bf16.mxu0 0
        %1359 = vmatpush1.bf16.msra.mxu0 %v960
        %1360 = vmatprep.subr.bf16.mxu0 0
        %1361 = vmatpush1.bf16.msra.mxu0 %v963
        %1362 = vmatprep.subr.bf16.mxu0 0
        %1363 = vmatpush1.bf16.msra.mxu0 %v966
        %1364 = vmatprep.subr.bf16.mxu0 0
        %1365 = vmatpush1.bf16.msra.mxu0 %v969
        %1366 = vmatprep.subr.bf16.mxu0 0
        %1367 = vmatpush1.bf16.msra.mxu0 %v972
        %1368 = vmatprep.mubr.bf16.mxu0 %v434
        %1369 = vmatmul.mubr.bf16.gmra.mrb[0].mxu0 %v433
        %v1370 = vpop.f32.mrb[0].mxu0
        %v1371 = vadd.f32 %v420, %v1370
        %v1372 = vpop.f32.mrb[0].mxu0
        %v1373 = vpop.f32.mrb[0].mxu0
        %v1374 = vpop.f32.mrb[0].mxu0
        %1375 = vdwg.mxu0
        %1376 = vmatprep.subr.bf16.mxu0 0
        %1377 = vmatpush1.bf16.msra.mxu0 %v975
        %1378 = vmatprep.subr.bf16.mxu0 0
        %1379 = vmatpush1.bf16.msra.mxu0 %v978
        %1380 = vmatprep.subr.bf16.mxu0 0
        %1381 = vmatpush1.bf16.msra.mxu0 %v981
        %1382 = vmatprep.subr.bf16.mxu0 0
        %1383 = vmatpush1.bf16.msra.mxu0 %v984
        %1384 = vmatprep.subr.bf16.mxu0 0
        %1385 = vmatpush1.bf16.msra.mxu0 %v987
        %1386 = vmatprep.subr.bf16.mxu0 0
        %1387 = vmatpush1.bf16.msra.mxu0 %v990
        %1388 = vmatprep.subr.bf16.mxu0 0
        %1389 = vmatpush1.bf16.msra.mxu0 %v993
        %1390 = vmatprep.subr.bf16.mxu0 0
        %1391 = vmatpush1.bf16.msra.mxu0 %v996
        %1392 = vmatprep.subr.bf16.mxu0 0
        %1393 = vmatpush1.bf16.msra.mxu0 %v999
        %1394 = vmatprep.subr.bf16.mxu0 0
        %1395 = vmatpush1.bf16.msra.mxu0 %v1002
        %1396 = vmatprep.subr.bf16.mxu0 0
        %1397 = vmatpush1.bf16.msra.mxu0 %v1005
        %1398 = vmatprep.subr.bf16.mxu0 0
        %1399 = vmatpush1.bf16.msra.mxu0 %v1008
        %1400 = vmatprep.subr.bf16.mxu0 0
        %1401 = vmatpush1.bf16.msra.mxu0 %v1011
        %1402 = vmatprep.subr.bf16.mxu0 0
        %1403 = vmatpush1.bf16.msra.mxu0 %v1014
        %1404 = vmatprep.subr.bf16.mxu0 0
        %1405 = vmatpush1.bf16.msra.mxu0 %v1017
        %1406 = vmatprep.subr.bf16.mxu0 0
        %1407 = vmatpush1.bf16.msra.mxu0 %v1020
        %1408 = vmatprep.mubr.bf16.mxu0 %v436
        %1409 = vmatmul.mubr.bf16.gmra.mrb[0].mxu0 %v435
        %v1410 = vpop.f32.mrb[0].mxu0
        %v1411 = vadd.f32 %v1371, %v1410
        %v1412 = vpop.f32.mrb[0].mxu0
        %v1413 = vpop.f32.mrb[0].mxu0
        %v1414 = vpop.f32.mrb[0].mxu0
        %1415 = vdwg.mxu0
        %1416 = vmatprep.subr.bf16.mxu0 0
        %1417 = vmatpush1.bf16.msra.mxu0 %v1023
        %1418 = vmatprep.subr.bf16.mxu0 0
        %1419 = vmatpush1.bf16.msra.mxu0 %v1026
        %1420 = vmatprep.subr.bf16.mxu0 0
        %1421 = vmatpush1.bf16.msra.mxu0 %v1029
        %1422 = vmatprep.subr.bf16.mxu0 0
        %1423 = vmatpush1.bf16.msra.mxu0 %v1032
        %1424 = vmatprep.subr.bf16.mxu0 0
        %1425 = vmatpush1.bf16.msra.mxu0 %v1035
        %1426 = vmatprep.subr.bf16.mxu0 0
        %1427 = vmatpush1.bf16.msra.mxu0 %v1038
        %1428 = vmatprep.subr.bf16.mxu0 0
        %1429 = vmatpush1.bf16.msra.mxu0 %v1041
        %1430 = vmatprep.subr.bf16.mxu0 0
        %1431 = vmatpush1.bf16.msra.mxu0 %v1044
        %1432 = vmatprep.subr.bf16.mxu0 0
        %1433 = vmatpush1.bf16.msra.mxu0 %v1047
        %1434 = vmatprep.subr.bf16.mxu0 0
        %1435 = vmatpush1.bf16.msra.mxu0 %v1050
        %1436 = vmatprep.subr.bf16.mxu0 0
        %1437 = vmatpush1.bf16.msra.mxu0 %v1053
        %1438 = vmatprep.subr.bf16.mxu0 0
        %1439 = vmatpush1.bf16.msra.mxu0 %v1056
        %1440 = vmatprep.subr.bf16.mxu0 0
        %1441 = vmatpush1.bf16.msra.mxu0 %v1059
        %1442 = vmatprep.subr.bf16.mxu0 0
        %1443 = vmatpush1.bf16.msra.mxu0 %v1062
        %1444 = vmatprep.subr.bf16.mxu0 0
        %1445 = vmatpush1.bf16.msra.mxu0 %v1065
        %1446 = vmatprep.subr.bf16.mxu0 0
        %1447 = vmatpush1.bf16.msra.mxu0 %v1068
        %1448 = vmatprep.mubr.bf16.mxu0 %v438
        %1449 = vmatmul.mubr.bf16.gmra.mrb[0].mxu0 %v437
        %v1450 = vpop.f32.mrb[0].mxu0
        %v1451 = vadd.f32 %v1411, %v1450
        %v1452 = vpop.f32.mrb[0].mxu0
        %v1453 = vpop.f32.mrb[0].mxu0
        %v1454 = vpop.f32.mrb[0].mxu0
        %1455 = vdwg.mxu0
        %vm1456 = vcmp.gt.f32.partialorder %v1330, 0.0
        %vm1457 = vcmp.gt.f32.partialorder %v1332, 0.0
        %vm1458 = vcmp.gt.f32.partialorder %v1451, 0.0
        %v1459 = vmin.f32 %v1330, 0.0
        %v1460 = vmin.f32 %v1332, 0.0
        %v1461 = vmin.f32 %v1451, 0.0
        %v1462 = vmul.f32 %v1459, 1.442695
        %v1463 = vpow.pop %v1462
        %v1464 = vmul.f32 %v1460, 1.442695
        %v1465 = vpow.pop %v1464
        %v1466 = vmul.f32 %v1461, 1.442695
        %v1467 = vpow.pop %v1466
        %v1468 = vsub.f32 %v1463, 1.0
        %v1469 = vsub.f32 %v1465, 1.0
        %v1470 = vsub.f32 %v1467, 1.0
        %v1471 = vsel %vm1456, %v1330, %v1468
        %v1472 = vsel %vm1457, %v1332, %v1469
        %v1473 = vsel %vm1458, %v1451, %v1470
        %v1474 = vpack.c.bf16 %v1471, %v1471
        %v1475 = vpack.c.bf16 %v1472, %v1472
        %v1476 = vpack.c.bf16 %v1473, %v1473
        %v1477 = vld [vmem:[%s3] sm:$0xff]
        %v1478 = vld [vmem:[%s3 + $0x8] sm:$0xff]
        %v1479 = vld [vmem:[%s3 + $0x10] sm:$0xff]
        %v1480 = vld [vmem:[%s3 + $0x18] sm:$0xff]
        %v1481 = vld [vmem:[%s3 + $0x20] sm:$0xff]
        %v1482 = vld [vmem:[%s3 + $0x28] sm:$0xff]
        %v1483 = vld [vmem:[%s3 + $0x30] sm:$0xff]
        %v1484 = vld [vmem:[%s3 + $0x38] sm:$0xff]
        %v1485 = vld [vmem:[%s3 + $0x40] sm:$0xff]
        %v1486 = vld [vmem:[%s3 + $0x48] sm:$0xff]
        %v1487 = vld [vmem:[%s3 + $0x50] sm:$0xff]
        %v1488 = vld [vmem:[%s3 + $0x58] sm:$0xff]
        %v1489 = vld [vmem:[%s3 + $0x60] sm:$0xff]
        %v1490 = vld [vmem:[%s3 + $0x68] sm:$0xff]
        %v1491 = vld [vmem:[%s3 + $0x70] sm:$0xff]
        %v1492 = vld [vmem:[%s3 + $0x78] sm:$0xff]
        %v1493 = vld [vmem:[%s3 + $0x80] sm:$0xff]
        %v1494 = vld [vmem:[%s3 + $0x88] sm:$0xff]
        %v1495 = vld [vmem:[%s3 + $0x90] sm:$0xff]
        %v1496 = vld [vmem:[%s3 + $0x98] sm:$0xff]
        %v1497 = vld [vmem:[%s3 + $0xa0] sm:$0xff]
        %v1498 = vld [vmem:[%s3 + $0xa8] sm:$0xff]
        %v1499 = vld [vmem:[%s3 + $0xb0] sm:$0xff]
        %v1500 = vld [vmem:[%s3 + $0xb8] sm:$0xff]
        %v1501 = vld [vmem:[%s3 + $0xc0] sm:$0xff]
        %v1502 = vld [vmem:[%s3 + $0xc8] sm:$0xff]
        %v1503 = vld [vmem:[%s3 + $0xd0] sm:$0xff]
        %v1504 = vld [vmem:[%s3 + $0xd8] sm:$0xff]
        %v1505 = vld [vmem:[%s3 + $0xe0] sm:$0xff]
        %v1506 = vld [vmem:[%s3 + $0xe8] sm:$0xff]
        %v1507 = vld [vmem:[%s3 + $0xf0] sm:$0xff]
        %v1508 = vld [vmem:[%s3 + $0xf8] sm:$0xff]
        %v1509 = vld [vmem:[%s3 + $0x100] sm:$0xff]
        %v1510 = vld [vmem:[%s3 + $0x108] sm:$0xff]
        %v1511 = vld [vmem:[%s3 + $0x110] sm:$0xff]
        %v1512 = vld [vmem:[%s3 + $0x118] sm:$0xff]
        %v1513 = vld [vmem:[%s3 + $0x120] sm:$0xff]
        %v1514 = vld [vmem:[%s3 + $0x128] sm:$0xff]
        %v1515 = vld [vmem:[%s3 + $0x130] sm:$0xff]
        %v1516 = vld [vmem:[%s3 + $0x138] sm:$0xff]
        %v1517 = vld [vmem:[%s3 + $0x140] sm:$0xff]
        %v1518 = vld [vmem:[%s3 + $0x148] sm:$0xff]
        %v1519 = vld [vmem:[%s3 + $0x150] sm:$0xff]
        %v1520 = vld [vmem:[%s3 + $0x158] sm:$0xff]
        %v1521 = vld [vmem:[%s3 + $0x160] sm:$0xff]
        %v1522 = vld [vmem:[%s3 + $0x168] sm:$0xff]
        %v1523 = vld [vmem:[%s3 + $0x170] sm:$0xff]
        %v1524 = vld [vmem:[%s3 + $0x178] sm:$0xff]
        %v1573 = vunpack.c.l.b16 %v1477
        %v1574 = vunpack.c.h.b16 %v1477
        %v1575 = vunpack.c.l.b16 %v1478
        %v1576 = vunpack.c.h.b16 %v1478
        %v1577 = vunpack.c.l.b16 %v1479
        %v1578 = vunpack.c.h.b16 %v1479
        %v1579 = vunpack.c.l.b16 %v1480
        %v1580 = vunpack.c.h.b16 %v1480
        %v1581 = vunpack.c.l.b16 %v1481
        %v1582 = vunpack.c.h.b16 %v1481
        %v1583 = vunpack.c.l.b16 %v1482
        %v1584 = vunpack.c.h.b16 %v1482
        %v1585 = vunpack.c.l.b16 %v1483
        %v1586 = vunpack.c.h.b16 %v1483
        %v1587 = vunpack.c.l.b16 %v1484
        %v1588 = vunpack.c.h.b16 %v1484
        %v1589 = vunpack.c.l.b16 %v1485
        %v1590 = vunpack.c.h.b16 %v1485
        %v1591 = vunpack.c.l.b16 %v1486
        %v1592 = vunpack.c.h.b16 %v1486
        %v1593 = vunpack.c.l.b16 %v1487
        %v1594 = vunpack.c.h.b16 %v1487
        %v1595 = vunpack.c.l.b16 %v1488
        %v1596 = vunpack.c.h.b16 %v1488
        %v1597 = vunpack.c.l.b16 %v1489
        %v1598 = vunpack.c.h.b16 %v1489
        %v1599 = vunpack.c.l.b16 %v1490
        %v1600 = vunpack.c.h.b16 %v1490
        %v1601 = vunpack.c.l.b16 %v1491
        %v1602 = vunpack.c.h.b16 %v1491
        %v1603 = vunpack.c.l.b16 %v1492
        %v1604 = vunpack.c.h.b16 %v1492
        %v1605 = vunpack.c.l.b16 %v1493
        %v1606 = vunpack.c.h.b16 %v1493
        %v1607 = vunpack.c.l.b16 %v1494
        %v1608 = vunpack.c.h.b16 %v1494
        %v1609 = vunpack.c.l.b16 %v1495
        %v1610 = vunpack.c.h.b16 %v1495
        %v1611 = vunpack.c.l.b16 %v1496
        %v1612 = vunpack.c.h.b16 %v1496
        %v1613 = vunpack.c.l.b16 %v1497
        %v1614 = vunpack.c.h.b16 %v1497
        %v1615 = vunpack.c.l.b16 %v1498
        %v1616 = vunpack.c.h.b16 %v1498
        %v1617 = vunpack.c.l.b16 %v1499
        %v1618 = vunpack.c.h.b16 %v1499
        %v1619 = vunpack.c.l.b16 %v1500
        %v1620 = vunpack.c.h.b16 %v1500
        %v1621 = vunpack.c.l.b16 %v1501
        %v1622 = vunpack.c.h.b16 %v1501
        %v1623 = vunpack.c.l.b16 %v1502
        %v1624 = vunpack.c.h.b16 %v1502
        %v1625 = vunpack.c.l.b16 %v1503
        %v1626 = vunpack.c.h.b16 %v1503
        %v1627 = vunpack.c.l.b16 %v1504
        %v1628 = vunpack.c.h.b16 %v1504
        %v1629 = vunpack.c.l.b16 %v1505
        %v1630 = vunpack.c.h.b16 %v1505
        %v1631 = vunpack.c.l.b16 %v1506
        %v1632 = vunpack.c.h.b16 %v1506
        %v1633 = vunpack.c.l.b16 %v1507
        %v1634 = vunpack.c.h.b16 %v1507
        %v1635 = vunpack.c.l.b16 %v1508
        %v1636 = vunpack.c.h.b16 %v1508
        %v1637 = vunpack.c.l.b16 %v1509
        %v1638 = vunpack.c.h.b16 %v1509
        %v1639 = vunpack.c.l.b16 %v1510
        %v1640 = vunpack.c.h.b16 %v1510
        %v1641 = vunpack.c.l.b16 %v1511
        %v1642 = vunpack.c.h.b16 %v1511
        %v1643 = vunpack.c.l.b16 %v1512
        %v1644 = vunpack.c.h.b16 %v1512
        %v1645 = vunpack.c.l.b16 %v1513
        %v1646 = vunpack.c.h.b16 %v1513
        %v1647 = vunpack.c.l.b16 %v1514
        %v1648 = vunpack.c.h.b16 %v1514
        %v1649 = vunpack.c.l.b16 %v1515
        %v1650 = vunpack.c.h.b16 %v1515
        %v1651 = vunpack.c.l.b16 %v1516
        %v1652 = vunpack.c.h.b16 %v1516
        %v1653 = vunpack.c.l.b16 %v1517
        %v1654 = vunpack.c.h.b16 %v1517
        %v1655 = vunpack.c.l.b16 %v1518
        %v1656 = vunpack.c.h.b16 %v1518
        %v1657 = vunpack.c.l.b16 %v1519
        %v1658 = vunpack.c.h.b16 %v1519
        %v1659 = vunpack.c.l.b16 %v1520
        %v1660 = vunpack.c.h.b16 %v1520
        %v1661 = vunpack.c.l.b16 %v1521
        %v1662 = vunpack.c.h.b16 %v1521
        %v1663 = vunpack.c.l.b16 %v1522
        %v1664 = vunpack.c.h.b16 %v1522
        %v1665 = vunpack.c.l.b16 %v1523
        %v1666 = vunpack.c.h.b16 %v1523
        %v1667 = vunpack.c.l.b16 %v1524
        %v1668 = vunpack.c.h.b16 %v1524
        %v1669 = vpack.c.b16 %v1575, %v1573
        %v1670 = vpack.c.b16 %v1576, %v1574
        %v1671 = vpack.c.b16 %v1579, %v1577
        %v1672 = vpack.c.b16 %v1580, %v1578
        %v1673 = vpack.c.b16 %v1583, %v1581
        %v1674 = vpack.c.b16 %v1584, %v1582
        %v1675 = vpack.c.b16 %v1587, %v1585
        %v1676 = vpack.c.b16 %v1588, %v1586
        %v1677 = vpack.c.b16 %v1591, %v1589
        %v1678 = vpack.c.b16 %v1592, %v1590
        %v1679 = vpack.c.b16 %v1595, %v1593
        %v1680 = vpack.c.b16 %v1596, %v1594
        %v1681 = vpack.c.b16 %v1599, %v1597
        %v1682 = vpack.c.b16 %v1600, %v1598
        %v1683 = vpack.c.b16 %v1603, %v1601
        %v1684 = vpack.c.b16 %v1604, %v1602
        %v1685 = vpack.c.b16 %v1607, %v1605
        %v1686 = vpack.c.b16 %v1608, %v1606
        %v1687 = vpack.c.b16 %v1611, %v1609
        %v1688 = vpack.c.b16 %v1612, %v1610
        %v1689 = vpack.c.b16 %v1615, %v1613
        %v1690 = vpack.c.b16 %v1616, %v1614
        %v1691 = vpack.c.b16 %v1619, %v1617
        %v1692 = vpack.c.b16 %v1620, %v1618
        %v1693 = vpack.c.b16 %v1623, %v1621
        %v1694 = vpack.c.b16 %v1624, %v1622
        %v1695 = vpack.c.b16 %v1627, %v1625
        %v1696 = vpack.c.b16 %v1628, %v1626
        %v1697 = vpack.c.b16 %v1631, %v1629
        %v1698 = vpack.c.b16 %v1632, %v1630
        %v1699 = vpack.c.b16 %v1635, %v1633
        %v1700 = vpack.c.b16 %v1636, %v1634
        %v1701 = vpack.c.b16 %v1639, %v1637
        %v1702 = vpack.c.b16 %v1640, %v1638
        %v1703 = vpack.c.b16 %v1643, %v1641
        %v1704 = vpack.c.b16 %v1644, %v1642
        %v1705 = vpack.c.b16 %v1647, %v1645
        %v1706 = vpack.c.b16 %v1648, %v1646
        %v1707 = vpack.c.b16 %v1651, %v1649
        %v1708 = vpack.c.b16 %v1652, %v1650
        %v1709 = vpack.c.b16 %v1655, %v1653
        %v1710 = vpack.c.b16 %v1656, %v1654
        %v1711 = vpack.c.b16 %v1659, %v1657
        %v1712 = vpack.c.b16 %v1660, %v1658
        %v1713 = vpack.c.b16 %v1663, %v1661
        %v1714 = vpack.c.b16 %v1664, %v1662
        %v1715 = vpack.c.b16 %v1667, %v1665
        %v1716 = vpack.c.b16 %v1668, %v1666
        %1765 = vmatprep.subr.bf16.mxu0 %v1670
        %1766 = vmatpush1.bf16.msra.mxu0 %v1669
        %1767 = vmatprep.subr.bf16.mxu0 %v1672
        %1768 = vmatpush1.bf16.msra.mxu0 %v1671
        %1769 = vmatprep.subr.bf16.mxu0 %v1674
        %1770 = vmatpush1.bf16.msra.mxu0 %v1673
        %1771 = vmatprep.subr.bf16.mxu0 %v1676
        %1772 = vmatpush1.bf16.msra.mxu0 %v1675
        %1773 = vmatprep.subr.bf16.mxu0 %v1678
        %1774 = vmatpush1.bf16.msra.mxu0 %v1677
        %1775 = vmatprep.subr.bf16.mxu0 %v1680
        %1776 = vmatpush1.bf16.msra.mxu0 %v1679
        %1777 = vmatprep.subr.bf16.mxu0 %v1682
        %1778 = vmatpush1.bf16.msra.mxu0 %v1681
        %1779 = vmatprep.subr.bf16.mxu0 %v1684
        %1780 = vmatpush1.bf16.msra.mxu0 %v1683
        %1781 = vmatprep.subr.bf16.mxu0 %v1686
        %1782 = vmatpush1.bf16.msra.mxu0 %v1685
        %1783 = vmatprep.subr.bf16.mxu0 %v1688
        %1784 = vmatpush1.bf16.msra.mxu0 %v1687
        %1785 = vmatprep.subr.bf16.mxu0 %v1690
        %1786 = vmatpush1.bf16.msra.mxu0 %v1689
        %1787 = vmatprep.subr.bf16.mxu0 %v1692
        %1788 = vmatpush1.bf16.msra.mxu0 %v1691
        %1789 = vmatprep.subr.bf16.mxu0 %v1694
        %1790 = vmatpush1.bf16.msra.mxu0 %v1693
        %1791 = vmatprep.subr.bf16.mxu0 %v1696
        %1792 = vmatpush1.bf16.msra.mxu0 %v1695
        %1793 = vmatprep.subr.bf16.mxu0 %v1698
        %1794 = vmatpush1.bf16.msra.mxu0 %v1697
        %1795 = vmatprep.subr.bf16.mxu0 %v1700
        %1796 = vmatpush1.bf16.msra.mxu0 %v1699
        %1797 = vmatprep.mubr.bf16.mxu0 %v1475
        %1798 = vmatmul.mubr.bf16.gmra.mrb[0].mxu0 %v1474
        %v1799 = vpop.f32.mrb[0].mxu0
        %v1800 = vadd.f32 0.0, %v1799
        %v1801 = vpop.f32.mrb[0].mxu0
        %v1802 = vadd.f32 0.0, %v1801
        %v1803 = vpop.f32.mrb[0].mxu0
        %v1804 = vpop.f32.mrb[0].mxu0
        %1805 = vdwg.mxu0
        %1806 = vmatprep.subr.bf16.mxu0 %v1702
        %1807 = vmatpush1.bf16.msra.mxu0 %v1701
        %1808 = vmatprep.subr.bf16.mxu0 %v1704
        %1809 = vmatpush1.bf16.msra.mxu0 %v1703
        %1810 = vmatprep.subr.bf16.mxu0 %v1706
        %1811 = vmatpush1.bf16.msra.mxu0 %v1705
        %1812 = vmatprep.subr.bf16.mxu0 %v1708
        %1813 = vmatpush1.bf16.msra.mxu0 %v1707
        %1814 = vmatprep.subr.bf16.mxu0 %v1710
        %1815 = vmatpush1.bf16.msra.mxu0 %v1709
        %1816 = vmatprep.subr.bf16.mxu0 %v1712
        %1817 = vmatpush1.bf16.msra.mxu0 %v1711
        %1818 = vmatprep.subr.bf16.mxu0 %v1714
        %1819 = vmatpush1.bf16.msra.mxu0 %v1713
        %1820 = vmatprep.subr.bf16.mxu0 %v1716
        %1821 = vmatpush1.bf16.msra.mxu0 %v1715
        %1822 = vmatprep.subr.bf16.mxu0 0
        %1823 = vmatpush1.bf16.msra.mxu0 0
        %1824 = vmatprep.subr.bf16.mxu0 0
        %1825 = vmatpush1.bf16.msra.mxu0 0
        %1826 = vmatprep.subr.bf16.mxu0 0
        %1827 = vmatpush1.bf16.msra.mxu0 0
        %1828 = vmatprep.subr.bf16.mxu0 0
        %1829 = vmatpush1.bf16.msra.mxu0 0
        %1830 = vmatprep.subr.bf16.mxu0 0
        %1831 = vmatpush1.bf16.msra.mxu0 0
        %1832 = vmatprep.subr.bf16.mxu0 0
        %1833 = vmatpush1.bf16.msra.mxu0 0
        %1834 = vmatprep.subr.bf16.mxu0 0
        %1835 = vmatpush1.bf16.msra.mxu0 0
        %1836 = vmatprep.subr.bf16.mxu0 0
        %1837 = vmatpush1.bf16.msra.mxu0 0
        %1838 = vmatprep.mubr.bf16.mxu0 0
        %1839 = vmatmul.mubr.bf16.gmra.mrb[0].mxu0 %v1476
        %v1840 = vpop.f32.mrb[0].mxu0
        %v1841 = vadd.f32 %v1800, %v1840
        %v1842 = vpop.f32.mrb[0].mxu0
        %v1843 = vadd.f32 %v1802, %v1842
        %v1844 = vpop.f32.mrb[0].mxu0
        %v1845 = vpop.f32.mrb[0].mxu0
        %1846 = vdwg.mxu0
        %v1847 = vpack.c.bf16 %v1841, %v1841
        %v1848 = vpack.c.bf16 %v1843, %v1843
        %v1851 = vunpack.c.l.b16 %v1847
        %v1852 = vunpack.c.l.b16 %v1848
        %v1853 = vpack.c.b16 %v1852, %v1851
        %vm1855 = vcmask 1043456
        %vm1856 = vcmask 523268
        %vm1857 = vmor %vm1856, %vm1855
        %1858 = vst.msk [vmem:[%s205] sm:$0xff] %vm1857, %v1853
        %s1859 = sand.u32 %s116, 1
        %s1860 = scalar_lea.sflag [#allocation4], %s1859
        %s1861 = sand.u32 %s116, 1
        %s1862 = smul.addr %s1861, 8
        %s1863 = scalar_lea.vmem [#allocation5], %s1862
        // Predicated region
        $region41: #{tpu_custom_call.1} parent=35 // pred_check
          %p1864 = pneg %p126
        $region42: #{tpu_custom_call.1} parent=35 // pred_check_branch
          %1866 = sbr.rel (%p1864) target = $region44
        $region43: #{tpu_custom_call.1} parent=35 // pred_region
          %s1868 = ssub.s32 128, 128
          %1869 = vsyncadd %s1860, %s1868
          %s1870 = smul.addr %s19, 2
          %s1871 = smul.addr %s1870, 64
          %s1872 = scalar_lea.hbm %s4, %s1871
          %s1874 = sshll.u32 %s1863, 4
          %s1875 = int_to_ptr.vmem [resolvable:$true] %s1874
          %1877 = dma.vmem_to_hbm [thread:$0]  %s1875, 128, %s1872, %s1860
        $region44: #{tpu_custom_call.1} parent=35 // pred_fallthru
          _
      $region36: #{tpu_custom_call.1} parent=5 // pred_fallthru
        _
      %p1878 = scmp.le.s32.totalorder 2, %s14
      // Predicated region
      $region45: #{tpu_custom_call.1} parent=5 // pred_check
        %p1879 = pneg %p1878
      $region46: #{tpu_custom_call.1} parent=5 // pred_check_branch
        %1881 = sbr.rel (%p1879) target = $region48
      $region47: #{tpu_custom_call.1} parent=5 // pred_region
        %s1882 = ssub.s32 %s14, 2
        // Predicated region
        $region49: #{tpu_custom_call.1} parent=47 // pred_check
          %p1883 = pneg %p132
        $region50: #{tpu_custom_call.1} parent=47 // pred_check_branch
          %1885 = sbr.rel (%p1883) target = $region52
        $region51: #{tpu_custom_call.1} parent=47 // pred_region
          %s1886 = sand.u32 %s117, 1
          %s1887 = scalar_lea.sflag [#allocation4], %s1886
          %s1888 = sand.u32 %s117, 1
          %s1889 = smul.addr %s1888, 8
          %s1890 = scalar_lea.vmem [#allocation5], %s1889
          %1891 = dma.done %s1887, 128
        $region52: #{tpu_custom_call.1} parent=47 // pred_fallthru
          _
      $region48: #{tpu_custom_call.1} parent=5 // pred_fallthru
        _
    $region6: #{tpu_custom_call.1} parent=1 // loop_footer
      %s18 = sadd.s32 1, %s14
    $region7: #{tpu_custom_call.1} parent=1 // loop_footer_branch
      %13 = sbr.rel target = $region3
    $region8: #{tpu_custom_call.1} parent=1 // loop_exit
      _
    %1892 = vsyncpa [#allocation3], 1
    %s1893 = scalar_lea.sflag [#allocation3], 1
    %1894 = vsyncpa %s1893, 1
    %1895 = vsyncpa [#allocation4], 1
    %s1896 = scalar_lea.sflag [#allocation4], 1
    %1897 = vsyncpa %s1896, 1

</llo_original>
